<compile_context>
chip_gen: v7x
topology: tpu7x:2x2x1
jax: 0.10.0
libtpu: 0.0.40
codegen_flags: <defaults>
</compile_context>

<pallas_src>
import functools

import jax
import jax.numpy as jnp
from jax.experimental import pallas as pl
from jax.experimental.pallas import tpu as pltpu

C1 = 16      # number of DFL bins (DFL(c1=16) default)
LANE = 128


def _round_up(n, m):
    return pl.cdiv(n, m) * m


def dfl_kernel(x_ref, w_ref, o_ref):
    # x_ref: (1, 4*C1, TA) ; w_ref: (8, 4*C1) f32 ; o_ref: (1, 4, TA)
    x = x_ref[0].astype(jnp.float32)                     # (64, TA), f32 compute
    # Per-box-side max => each group's exponentials are <= 1 and its softmax
    # denominator is >= 1 (no underflow, safe exact divide).
    exps = []
    for j in range(4):
        g = x[j * C1:(j + 1) * C1]                       # (C1, TA) static slice
        mj = jnp.max(g, axis=0, keepdims=True)           # (1, TA)  XLU reduce
        exps.append(jnp.exp(g - mj))                     # EUP
    e = jnp.concatenate(exps, axis=0)                    # (64, TA)
    # rows 0..3: sum_i i*exp(.) ; rows 4..7: sum_i exp(.)  -> one MXU matmul.
    # HIGHEST precision keeps the f32 accumulation exact (multi-pass MXU).
    r = jnp.dot(w_ref[...], e,
                preferred_element_type=jnp.float32,
                precision=jax.lax.Precision.HIGHEST)     # (8, TA)
    o_ref[0] = (r[:4] / r[4:]).astype(o_ref.dtype)       # exact divide


def _build_w8(weight, c1=C1):
    """(8, 4*c1) block-diagonal matrix: rows 0-3 = arange blocks, rows 4-7 = ones."""
    w = jnp.asarray(weight, jnp.float32).reshape(-1)     # (c1,)
    mat = jnp.zeros((8, 4 * c1), jnp.float32)
    for j in range(4):
        mat = mat.at[j, j * c1:(j + 1) * c1].set(w)
        mat = mat.at[4 + j, j * c1:(j + 1) * c1].set(1.0)
    return mat


@functools.partial(jax.jit, static_argnames=("ta_target",))
def dfl_forward(x, weight, *, ta_target=2048):
    """x: (b, 4*C1, a), weight: (C1,) or (C1, 1) -> (b, 4, a)."""
    b, c, a = x.shape
    assert c == 4 * C1
    # Lane-aligned anchor tile.  Large tiles amortize the ~0.35us/step grid
    # overhead; VMEM stays tiny (64 x 2048 x 4B = 512 KiB per input buffer).
    ta = min(ta_target, _round_up(a, LANE))
    if b == 1:
        # Keep at least two anchor tiles so both v7x TensorCores share the work.
        ta = min(ta, max(LANE, _round_up(pl.cdiv(a, 2), LANE)))

    # No full-tile padding: Pallas masks the partial last block.  Only pad when
    # the whole anchor axis is smaller than one lane-aligned tile (cheap: x is
    # tiny in that case).
    a_pad, xin = a, x
    if ta > a:
        a_pad = ta
        xin = jnp.pad(x, ((0, 0), (0, 0), (0, ta - a)))

    w8 = _build_w8(weight)

    cost = pl.CostEstimate(
        flops=2 * b * 8 * c * a_pad,                     # (8,64)x(64,A) matmul
        transcendentals=b * c * a_pad,                   # exp
        bytes_accessed=(b * c * a_pad + b * 4 * a_pad) * x.dtype.itemsize,
    )

    out = pl.pallas_call(
        dfl_kernel,
        out_shape=jax.ShapeDtypeStruct((b, 4, a_pad), x.dtype),
        grid=(b, pl.cdiv(a_pad, ta)),
        in_specs=[
            pl.BlockSpec((1, c, ta), lambda i, j: (i, 0, j)),   # per (batch, anchor tile)
            pl.BlockSpec((8, c), lambda i, j: (0, 0)),          # constant weight matrix
        ],
        out_specs=pl.BlockSpec((1, 4, ta), lambda i, j: (i, 0, j)),
        compiler_params=pltpu.CompilerParams(
            dimension_semantics=("parallel", "parallel")),
        cost_estimate=cost,
    )(xin, w8)
    return out[:, :, :a] if a_pad != a else out


def dfl_reference(x, weight):
    b, c, a = x.shape
    xr = x.reshape(b, 4, C1, a).transpose(0, 2, 1, 3)    # (b, c1, 4, a)
    p = jax.nn.softmax(xr.astype(jnp.float32), axis=1)
    return jnp.einsum("bcfa,c->bfa", p,
                      jnp.asarray(weight, jnp.float32).reshape(-1)).astype(x.dtype)


if __name__ == "__main__":
    key = jax.random.PRNGKey(0)
    B, A = 2, 300          # A deliberately not a multiple of 128
    x = jax.random.normal(key, (B, 4 * C1, A), dtype=jnp.float32)

    # Deterministic parameter mirroring DFL.__init__: conv weight = arange(c1)
    weight = jnp.arange(C1, dtype=jnp.float32)

    out = jax.block_until_ready(dfl_forward(x, weight))
    ref = dfl_reference(x, weight)

    assert out.shape == (B, 4, A)
    assert jnp.allclose(out, ref, atol=2e-3, rtol=2e-3), (
        f"mismatch vs reference, max abs err {jnp.max(jnp.abs(out - ref))}")

    print("KERNEL_OK")
</pallas_src>

<mosaic_0001>
module attributes {stable_mosaic.version = 11 : i64} {
  func.func @dfl_kernel(%arg0: i32, %arg1: i32, %arg2: memref<1x64x384xf32, #tpu.memory_space<vmem>>, %arg3: memref<8x64xf32, #tpu.memory_space<vmem>>, %arg4: memref<1x4x384xf32, #tpu.memory_space<vmem>>) attributes {dimension_semantics = [#tpu.dimension_semantics<parallel>, #tpu.dimension_semantics<parallel>], iteration_bounds = array<i64: 2, 1>, scalar_prefetch = 0 : i64, scratch_operands = 0 : i64, tpu.core_type = #tpu.core_type<tc>, window_params = [{transform_indices = @transform_0, window_bounds = array<i64: 1, 64, 384>}, {pipeline_mode = #tpu.pipeline_mode<synchronous>, transform_indices = @transform_1, window_bounds = array<i64: 8, 64>}, {transform_indices = @transform_2, window_bounds = array<i64: 1, 4, 384>}]} {
    %c0 = arith.constant 0 : index
    %c0_0 = arith.constant 0 : index
    %c0_1 = arith.constant 0 : index
    %0 = vector.load %arg2[%c0, %c0_0, %c0_1] : memref<1x64x384xf32, #tpu.memory_space<vmem>>, vector<1x64x384xf32>
    %1 = vector.shape_cast %0 : vector<1x64x384xf32> to vector<64x384xf32>
    %2 = vector.extract_strided_slice %1 {offsets = [0, 0], sizes = [16, 384], strides = [1, 1]} : vector<64x384xf32> to vector<16x384xf32>
    %cst = arith.constant dense<0xFF800000> : vector<384xf32>
    %3 = vector.multi_reduction <maximumf>, %2, %cst [0] : vector<16x384xf32> to vector<384xf32>
    %4 = vector.shape_cast %3 : vector<384xf32> to vector<1x384xf32>
    %5 = vector.broadcast %4 : vector<1x384xf32> to vector<16x384xf32>
    %6 = arith.subf %2, %5 : vector<16x384xf32>
    %7 = math.exp %6 : vector<16x384xf32>
    %8 = vector.extract_strided_slice %1 {offsets = [16, 0], sizes = [16, 384], strides = [1, 1]} : vector<64x384xf32> to vector<16x384xf32>
    %cst_2 = arith.constant dense<0xFF800000> : vector<384xf32>
    %9 = vector.multi_reduction <maximumf>, %8, %cst_2 [0] : vector<16x384xf32> to vector<384xf32>
    %10 = vector.shape_cast %9 : vector<384xf32> to vector<1x384xf32>
    %11 = vector.broadcast %10 : vector<1x384xf32> to vector<16x384xf32>
    %12 = arith.subf %8, %11 : vector<16x384xf32>
    %13 = math.exp %12 : vector<16x384xf32>
    %14 = vector.extract_strided_slice %1 {offsets = [32, 0], sizes = [16, 384], strides = [1, 1]} : vector<64x384xf32> to vector<16x384xf32>
    %cst_3 = arith.constant dense<0xFF800000> : vector<384xf32>
    %15 = vector.multi_reduction <maximumf>, %14, %cst_3 [0] : vector<16x384xf32> to vector<384xf32>
    %16 = vector.shape_cast %15 : vector<384xf32> to vector<1x384xf32>
    %17 = vector.broadcast %16 : vector<1x384xf32> to vector<16x384xf32>
    %18 = arith.subf %14, %17 : vector<16x384xf32>
    %19 = math.exp %18 : vector<16x384xf32>
    %20 = vector.extract_strided_slice %1 {offsets = [48, 0], sizes = [16, 384], strides = [1, 1]} : vector<64x384xf32> to vector<16x384xf32>
    %cst_4 = arith.constant dense<0xFF800000> : vector<384xf32>
    %21 = vector.multi_reduction <maximumf>, %20, %cst_4 [0] : vector<16x384xf32> to vector<384xf32>
    %22 = vector.shape_cast %21 : vector<384xf32> to vector<1x384xf32>
    %23 = vector.broadcast %22 : vector<1x384xf32> to vector<16x384xf32>
    %24 = arith.subf %20, %23 : vector<16x384xf32>
    %25 = math.exp %24 : vector<16x384xf32>
    %26 = tpu.concatenate %7, %13, %19, %25 in 0 : vector<16x384xf32>, vector<16x384xf32>, vector<16x384xf32>, vector<16x384xf32> -> vector<64x384xf32>
    %c0_5 = arith.constant 0 : index
    %c0_6 = arith.constant 0 : index
    %27 = vector.load %arg3[%c0_5, %c0_6] : memref<8x64xf32, #tpu.memory_space<vmem>>, vector<8x64xf32>
    %cst_7 = arith.constant dense<0.000000e+00> : vector<8x384xf32>
    %28 = tpu.matmul %27, %26, %cst_7 {dimension_numbers = #tpu.dot_dimension_numbers<[1], [0], [0], [1], [0, 0, 1, 1], [], []>, precision = #tpu.contract_precision<fp32>} : vector<8x64xf32>, vector<64x384xf32>, vector<8x384xf32> -> vector<8x384xf32>
    %29 = vector.extract_strided_slice %28 {offsets = [0, 0], sizes = [4, 384], strides = [1, 1]} : vector<8x384xf32> to vector<4x384xf32>
    %30 = vector.extract_strided_slice %28 {offsets = [4, 0], sizes = [4, 384], strides = [1, 1]} : vector<8x384xf32> to vector<4x384xf32>
    %31 = arith.divf %29, %30 : vector<4x384xf32>
    %c0_8 = arith.constant 0 : index
    %c0_9 = arith.constant 0 : index
    %c0_10 = arith.constant 0 : index
    %32 = vector.load %arg4[%c0_8, %c0_9, %c0_10] : memref<1x4x384xf32, #tpu.memory_space<vmem>>, vector<1x4x384xf32>
    %33 = vector.shape_cast %32 : vector<1x4x384xf32> to vector<4x384xf32>
    %34 = vector.shape_cast %31 : vector<4x384xf32> to vector<1x4x384xf32>
    tpu.vector_store %arg4[%c0_8, %c0_9, %c0_10], %34 {strides = array<i32>} : memref<1x4x384xf32, #tpu.memory_space<vmem>>, vector<1x4x384xf32>,
    return
  }
  func.func @transform_0(%arg0: i32, %arg1: i32) -> (i32, i32, i32) {
    %c0_i32 = arith.constant 0 : i32
    %c0_i32_0 = arith.constant 0 : i32
    return %arg0, %c0_i32, %arg1 : i32, i32, i32
  }
  func.func @transform_1(%arg0: i32, %arg1: i32) -> (i32, i32) {
    %c0_i32 = arith.constant 0 : i32
    %c0_i32_0 = arith.constant 0 : i32
    %c0_i32_1 = arith.constant 0 : i32
    return %c0_i32, %c0_i32_0 : i32, i32
  }
  func.func @transform_2(%arg0: i32, %arg1: i32) -> (i32, i32, i32) {
    %c0_i32 = arith.constant 0 : i32
    %c0_i32_0 = arith.constant 0 : i32
    return %arg0, %c0_i32, %arg1 : i32, i32, i32
  }
}

</mosaic_0001>

<llo_original>
// kernel: dfl_forward.1
$region0: #{dfl_forward.1}
  #allocation0 [shape = 'u32[]', space=smem, size = 0x4, offset = 0x4, fixed_abs, tag = 'smem constant byte address 0x4 - core index']
  #allocation1 [shape = 'u32[144,128]{1,0:T(1,128)}', space=vmem, size = 0x12000, scoped, tag = 'internal scratch']
  %s0 = inlined_call_operand.vmem [shape: f32[2,64,384], index: 0, kind: input, shape index: {}]
  %s1 = inlined_call_operand.vmem [shape: f32[8,64], index: 1, kind: input, shape index: {}]
  %s2 = inlined_call_operand.hbm [shape: f32[2,4,384], index: 2, kind: output, shape index: {}]
  %s3 = sld [smem:[#allocation0]]
  $region41: #{dfl_forward.1} parent=0
    _
  %s5 = ssub.s32 1, %s3
  %s6 = scalar_select 0, %s5, %s3
  $region1: #{dfl_forward.1} parent=0
    #allocation2 [shape = 'u8[12288]{0}', space=vmem, size = 0x3000, scoped, tag = 'output window, operand 0']
    #allocation3 [shape = 's32[2]{0}', space=sflag, size = 0x8, scoped, tag = 'scoped memory for dfl_forward.1']
    %7 = vsyncpa [#allocation3], 0
    %s8 = scalar_lea.sflag [#allocation3], 1
    %9 = vsyncpa %s8, 0
    loop: start=0, step=1, limit=4
    $region2: #{dfl_forward.1} parent=1 // loop_pre_header
      _
    $region3: #{dfl_forward.1} parent=1 // loop_header
      %s11 = sphi 0, %s15
      %p12 = scmp.ge.s32.totalorder %s11, 4
      %s18 = sphi 0, %s30
      %s19 = sphi 0, %s26
      %s20 = sphi 0, %s18
      %s21 = sphi 0, %s19
      %s22 = sphi 0, %s20
      %s23 = sphi 0, %s21
      %s35 = sphi 0, %s37
      %s38 = sphi 0, %s35
      %s39 = sphi 0, %s38
      %s55 = sphi 0, %s39
      %s59 = sphi 0, %s59
      %s61 = sphi 0, %s59
      %s62 = sphi 0, %s61
      %s76 = sphi 0, %s62
      %s84 = sphi 0, %s86
      %s87 = sphi 0, %s84
      %s88 = sphi 0, %s87
      %s104 = sphi 0, %s88
    $region4: #{dfl_forward.1} parent=1 // loop_header_branch
      %14 = sbr.rel (%p12) target = $region8
    $region5: #{dfl_forward.1} parent=1 // loop_body
      %s16 = ssub.s32 %s11, 1
      %s17 = ssub.s32 %s11, 2
      %s24 = sadd.s32 1, %s19
      %p25 = scmp.ge.s32.totalorder %s24, 1
      %s26 = scalar_select %p25, 0, %s24
      %s27 = sadd.s32 1, %s18
      %s28 = scalar_select %p25, %s27, %s18
      %p29 = scmp.ge.s32.totalorder %s28, 2
      %s30 = scalar_select %p29, 0, %s28
      %s31 = ssub.s32 %s18, %s30
      %s32 = ssub.s32 %s19, %s26
      %s33 = sor.u32 %s31, %s32
      %p34 = scmp.eq.s32.totalorder %s33, 0
      %s36 = sadd.s32 %s35, 1
      %s37 = scalar_select %p34, %s35, %s36
      %p40 = pneg %p34
      %p41 = scmp.eq.s32.totalorder %s11, 1
      %p42 = por %p40, %p41
      %p43 = scmp.ne.s32.totalorder %s35, %s38
      %p44 = scmp.eq.s32.totalorder %s11, 0
      %p45 = por %p43, %p44
      %p46 = scmp.ne.s32.totalorder %s35, %s38
      %p47 = scmp.eq.s32.totalorder %s16, 1
      %p48 = por %p46, %p47
      %p49 = scmp.ne.s32.totalorder %s38, %s39
      %p50 = scmp.eq.s32.totalorder %s16, 0
      %p51 = por %p49, %p50
      %p52 = scmp.ne.s32.totalorder %s38, %s39
      %p53 = scmp.eq.s32.totalorder %s17, 1
      %p54 = por %p52, %p53
      %p56 = scmp.ne.s32.totalorder %s39, %s55
      %p57 = scmp.eq.s32.totalorder %s17, 0
      %p58 = por %p56, %p57
      %s60 = sadd.s32 %s59, 1
      %p63 = scmp.eq.s32.totalorder %s11, 1
      %p64 = scmp.ne.s32.totalorder %s59, %s61
      %p65 = scmp.eq.s32.totalorder %s11, 0
      %p66 = por %p64, %p65
      %p67 = scmp.ne.s32.totalorder %s59, %s61
      %p68 = scmp.eq.s32.totalorder %s16, 1
      %p69 = por %p67, %p68
      %p70 = scmp.ne.s32.totalorder %s61, %s62
      %p71 = scmp.eq.s32.totalorder %s16, 0
      %p72 = por %p70, %p71
      %p73 = scmp.ne.s32.totalorder %s61, %s62
      %p74 = scmp.eq.s32.totalorder %s17, 1
      %p75 = por %p73, %p74
      %p77 = scmp.ne.s32.totalorder %s62, %s76
      %p78 = scmp.eq.s32.totalorder %s17, 0
      %p79 = por %p77, %p78
      %s80 = ssub.s32 %s18, %s30
      %s81 = ssub.s32 %s19, %s26
      %s82 = sor.u32 %s80, %s81
      %p83 = scmp.eq.s32.totalorder %s82, 0
      %s85 = sadd.s32 %s84, 1
      %s86 = scalar_select %p83, %s84, %s85
      %p89 = pneg %p83
      %p90 = scmp.eq.s32.totalorder %s11, 1
      %p91 = por %p89, %p90
      %p92 = scmp.ne.s32.totalorder %s84, %s87
      %p93 = scmp.eq.s32.totalorder %s11, 0
      %p94 = por %p92, %p93
      %p95 = scmp.ne.s32.totalorder %s84, %s87
      %p96 = scmp.eq.s32.totalorder %s16, 1
      %p97 = por %p95, %p96
      %p98 = scmp.ne.s32.totalorder %s87, %s88
      %p99 = scmp.eq.s32.totalorder %s16, 0
      %p100 = por %p98, %p99
      %p101 = scmp.ne.s32.totalorder %s87, %s88
      %p102 = scmp.eq.s32.totalorder %s17, 1
      %p103 = por %p101, %p102
      %p105 = scmp.ne.s32.totalorder %s88, %s104
      %p106 = scmp.eq.s32.totalorder %s17, 0
      %p107 = por %p105, %p106
      %p108 = scmp.le.s32.totalorder 1, %s11
      %p109 = scmp.lt.s32.totalorder %s11, 3
      %p110 = pnand %p108, %p109
      %p111 = pneg %p110
      // Predicated region
      $region9: #{dfl_forward.1} parent=5 // pred_check
        _
      $region10: #{dfl_forward.1} parent=5 // pred_check_branch
        %113 = sbr.rel (%p110) target = $region12
      $region11: #{dfl_forward.1} parent=5 // pred_region
        %s114 = ssub.s32 %s11, 1
        // Predicated region
        $region13: #{dfl_forward.1} parent=11 // pred_check
          %p115 = pneg %p72
        $region14: #{dfl_forward.1} parent=11 // pred_check_branch
          %117 = sbr.rel (%p115) target = $region16
        $region15: #{dfl_forward.1} parent=11 // pred_region
          _
        $region16: #{dfl_forward.1} parent=11 // pred_fallthru
          _
      $region12: #{dfl_forward.1} parent=5 // pred_fallthru
        _
      %p118 = scmp.lt.s32.totalorder %s11, 2
      // Predicated region
      $region17: #{dfl_forward.1} parent=5 // pred_check
        %p119 = pneg %p118
      $region18: #{dfl_forward.1} parent=5 // pred_check_branch
        %121 = sbr.rel (%p119) target = $region20
      $region19: #{dfl_forward.1} parent=5 // pred_region
        // Predicated region
        $region21: #{dfl_forward.1} parent=19 // pred_check
          %p122 = pneg %p45
        $region22: #{dfl_forward.1} parent=19 // pred_check_branch
          %124 = sbr.rel (%p122) target = $region24
        $region23: #{dfl_forward.1} parent=19 // pred_region
          %s125 = smul.u32 3, %s19
          %p126 = scmp.lt.s32.totalorder %s18, 1
          %s127 = scalar_select %p126, %s18, 1
          %p128 = scmp.lt.s32.totalorder %s125, 2
          %s129 = scalar_select %p128, %s125, 2
          %s130 = smul.addr %s127, 24
          %s131 = sadd.s32 %s129, %s130
          %s132 = smul.addr %s131, 8
          %s133 = scalar_lea.vmem %s0, %s132
          %s134 = smul.u32 3, %s19
        $region24: #{dfl_forward.1} parent=19 // pred_fallthru
          _
      $region20: #{dfl_forward.1} parent=5 // pred_fallthru
        _
      %p135 = scmp.le.s32.totalorder 1, %s11
      %p136 = scmp.lt.s32.totalorder %s11, 3
      %p137 = pnand %p135, %p136
      %p138 = pneg %p137
      // Predicated region
      $region25: #{dfl_forward.1} parent=5 // pred_check
        _
      $region26: #{dfl_forward.1} parent=5 // pred_check_branch
        %140 = sbr.rel (%p137) target = $region28
      $region27: #{dfl_forward.1} parent=5 // pred_region
        %s141 = ssub.s32 %s11, 1
        %s142 = smul.u32 3, %s21
        %p143 = scmp.lt.s32.totalorder %s20, 1
        %s144 = scalar_select %p143, %s20, 1
        %p145 = scmp.lt.s32.totalorder %s142, 2
        %s146 = scalar_select %p145, %s142, 2
        %s147 = smul.addr %s144, 24
        %s148 = sadd.s32 %s146, %s147
        %s149 = smul.addr %s148, 8
        %s150 = scalar_lea.vmem %s0, %s149
        %p151 = pneg %p51
        %p152 = pneg %p48
        %p153 = pneg %p72
        %p154 = pneg %p69
        %p155 = pneg %p100
        %p156 = pneg %p97
        %s157 = sand.u32 %s87, 1
        %s158 = scalar_lea.sflag [#allocation3], %s157
        %s159 = sand.u32 %s87, 1
        %s160 = smul.addr %s159, 12
        %s161 = scalar_lea.vmem [#allocation2], %s160
        %s162 = smul.u32 3, %s21
        %p163 = scmp.lt.s32.totalorder %s20, 1
        %s164 = scalar_select %p163, %s20, 1
        %p165 = scmp.lt.s32.totalorder %s162, 2
        %s166 = scalar_select %p165, %s162, 2
        %s167 = smul.addr %s164, 24
        %s168 = sadd.s32 %s166, %s167
        %s169 = smul.addr %s168, 8
        %s170 = scalar_lea.vmem %s0, %s169
        %s171 = smul.u32 3, %s21
        %s172 = smul.u32 3, %s21
        %v173 = vld [vmem:[%s170] sm:$0xff]
        %v174 = vld [vmem:[%s170 + $0x8] sm:$0xff]
        %v175 = vld [vmem:[%s170 + $0x10] sm:$0xff]
        %v176 = vld [vmem:[%s170 + $0x18] sm:$0xff]
        %v177 = vld [vmem:[%s170 + $0x20] sm:$0xff]
        %v178 = vld [vmem:[%s170 + $0x28] sm:$0xff]
        %v179 = vld [vmem:[%s170 + $0x30] sm:$0xff]
        %v180 = vld [vmem:[%s170 + $0x38] sm:$0xff]
        %v181 = vld [vmem:[%s170 + $0x40] sm:$0xff]
        %v182 = vld [vmem:[%s170 + $0x48] sm:$0xff]
        %v183 = vld [vmem:[%s170 + $0x50] sm:$0xff]
        %v184 = vld [vmem:[%s170 + $0x58] sm:$0xff]
        %v185 = vld [vmem:[%s170 + $0x60] sm:$0xff]
        %v186 = vld [vmem:[%s170 + $0x68] sm:$0xff]
        %v187 = vld [vmem:[%s170 + $0x70] sm:$0xff]
        %v188 = vld [vmem:[%s170 + $0x78] sm:$0xff]
        %v189 = vld [vmem:[%s170 + $0x80] sm:$0xff]
        %v190 = vld [vmem:[%s170 + $0x88] sm:$0xff]
        %v191 = vld [vmem:[%s170 + $0x90] sm:$0xff]
        %v192 = vld [vmem:[%s170 + $0x98] sm:$0xff]
        %v193 = vld [vmem:[%s170 + $0xa0] sm:$0xff]
        %v194 = vld [vmem:[%s170 + $0xa8] sm:$0xff]
        %v195 = vld [vmem:[%s170 + $0xb0] sm:$0xff]
        %v196 = vld [vmem:[%s170 + $0xb8] sm:$0xff]
        %v197 = vmax.f32 %v173, %v176
        %v198 = vrot.slane %v197, 4
        %v199 = vmax.f32 %v197, %v198
        %v200 = vrot.slane %v199, 2
        %v201 = vmax.f32 %v199, %v200
        %v202 = vrot.slane %v201, 1
        %v203 = vmax.f32 %v201, %v202
        %v204 = vmax.f32 %v174, %v177
        %v205 = vrot.slane %v204, 4
        %v206 = vmax.f32 %v204, %v205
        %v207 = vrot.slane %v206, 2
        %v208 = vmax.f32 %v206, %v207
        %v209 = vrot.slane %v208, 1
        %v210 = vmax.f32 %v208, %v209
        %v211 = vmax.f32 %v175, %v178
        %v212 = vrot.slane %v211, 4
        %v213 = vmax.f32 %v211, %v212
        %v214 = vrot.slane %v213, 2
        %v215 = vmax.f32 %v213, %v214
        %v216 = vrot.slane %v215, 1
        %v217 = vmax.f32 %v215, %v216
        %v218 = vsub.f32 %v173, %v203
        %v219 = vsub.f32 %v174, %v210
        %v220 = vsub.f32 %v175, %v217
        %v221 = vsub.f32 %v176, %v203
        %v222 = vsub.f32 %v177, %v210
        %v223 = vsub.f32 %v178, %v217
        %v224 = vmul.f32 %v218, 1.442695
        %v225 = vpow.pop %v224
        %v226 = vmul.f32 %v219, 1.442695
        %v227 = vpow.pop %v226
        %v228 = vmul.f32 %v220, 1.442695
        %v229 = vpow.pop %v228
        %v230 = vmul.f32 %v221, 1.442695
        %v231 = vpow.pop %v230
        %v232 = vmul.f32 %v222, 1.442695
        %v233 = vpow.pop %v232
        %v234 = vmul.f32 %v223, 1.442695
        %v235 = vpow.pop %v234
        %v236 = vmax.f32 %v179, %v182
        %v237 = vrot.slane %v236, 4
        %v238 = vmax.f32 %v236, %v237
        %v239 = vrot.slane %v238, 2
        %v240 = vmax.f32 %v238, %v239
        %v241 = vrot.slane %v240, 1
        %v242 = vmax.f32 %v240, %v241
        %v243 = vmax.f32 %v180, %v183
        %v244 = vrot.slane %v243, 4
        %v245 = vmax.f32 %v243, %v244
        %v246 = vrot.slane %v245, 2
        %v247 = vmax.f32 %v245, %v246
        %v248 = vrot.slane %v247, 1
        %v249 = vmax.f32 %v247, %v248
        %v250 = vmax.f32 %v181, %v184
        %v251 = vrot.slane %v250, 4
        %v252 = vmax.f32 %v250, %v251
        %v253 = vrot.slane %v252, 2
        %v254 = vmax.f32 %v252, %v253
        %v255 = vrot.slane %v254, 1
        %v256 = vmax.f32 %v254, %v255
        %v257 = vsub.f32 %v179, %v242
        %v258 = vsub.f32 %v180, %v249
        %v259 = vsub.f32 %v181, %v256
        %v260 = vsub.f32 %v182, %v242
        %v261 = vsub.f32 %v183, %v249
        %v262 = vsub.f32 %v184, %v256
        %v263 = vmul.f32 %v257, 1.442695
        %v264 = vpow.pop %v263
        %v265 = vmul.f32 %v258, 1.442695
        %v266 = vpow.pop %v265
        %v267 = vmul.f32 %v259, 1.442695
        %v268 = vpow.pop %v267
        %v269 = vmul.f32 %v260, 1.442695
        %v270 = vpow.pop %v269
        %v271 = vmul.f32 %v261, 1.442695
        %v272 = vpow.pop %v271
        %v273 = vmul.f32 %v262, 1.442695
        %v274 = vpow.pop %v273
        %v275 = vmax.f32 %v185, %v188
        %v276 = vrot.slane %v275, 4
        %v277 = vmax.f32 %v275, %v276
        %v278 = vrot.slane %v277, 2
        %v279 = vmax.f32 %v277, %v278
        %v280 = vrot.slane %v279, 1
        %v281 = vmax.f32 %v279, %v280
        %v282 = vmax.f32 %v186, %v189
        %v283 = vrot.slane %v282, 4
        %v284 = vmax.f32 %v282, %v283
        %v285 = vrot.slane %v284, 2
        %v286 = vmax.f32 %v284, %v285
        %v287 = vrot.slane %v286, 1
        %v288 = vmax.f32 %v286, %v287
        %v289 = vmax.f32 %v187, %v190
        %v290 = vrot.slane %v289, 4
        %v291 = vmax.f32 %v289, %v290
        %v292 = vrot.slane %v291, 2
        %v293 = vmax.f32 %v291, %v292
        %v294 = vrot.slane %v293, 1
        %v295 = vmax.f32 %v293, %v294
        %v296 = vsub.f32 %v185, %v281
        %v297 = vsub.f32 %v186, %v288
        %v298 = vsub.f32 %v187, %v295
        %v299 = vsub.f32 %v188, %v281
        %v300 = vsub.f32 %v189, %v288
        %v301 = vsub.f32 %v190, %v295
        %v302 = vmul.f32 %v296, 1.442695
        %v303 = vpow.pop %v302
        %v304 = vmul.f32 %v297, 1.442695
        %v305 = vpow.pop %v304
        %v306 = vmul.f32 %v298, 1.442695
        %v307 = vpow.pop %v306
        %v308 = vmul.f32 %v299, 1.442695
        %v309 = vpow.pop %v308
        %v310 = vmul.f32 %v300, 1.442695
        %v311 = vpow.pop %v310
        %v312 = vmul.f32 %v301, 1.442695
        %v313 = vpow.pop %v312
        %v314 = vmax.f32 %v191, %v194
        %v315 = vrot.slane %v314, 4
        %v316 = vmax.f32 %v314, %v315
        %v317 = vrot.slane %v316, 2
        %v318 = vmax.f32 %v316, %v317
        %v319 = vrot.slane %v318, 1
        %v320 = vmax.f32 %v318, %v319
        %v321 = vmax.f32 %v192, %v195
        %v322 = vrot.slane %v321, 4
        %v323 = vmax.f32 %v321, %v322
        %v324 = vrot.slane %v323, 2
        %v325 = vmax.f32 %v323, %v324
        %v326 = vrot.slane %v325, 1
        %v327 = vmax.f32 %v325, %v326
        %v328 = vmax.f32 %v193, %v196
        %v329 = vrot.slane %v328, 4
        %v330 = vmax.f32 %v328, %v329
        %v331 = vrot.slane %v330, 2
        %v332 = vmax.f32 %v330, %v331
        %v333 = vrot.slane %v332, 1
        %v334 = vmax.f32 %v332, %v333
        %v335 = vsub.f32 %v191, %v320
        %v336 = vsub.f32 %v192, %v327
        %v337 = vsub.f32 %v193, %v334
        %v338 = vsub.f32 %v194, %v320
        %v339 = vsub.f32 %v195, %v327
        %v340 = vsub.f32 %v196, %v334
        %v341 = vmul.f32 %v335, 1.442695
        %v342 = vpow.pop %v341
        %v343 = vmul.f32 %v336, 1.442695
        %v344 = vpow.pop %v343
        %v345 = vmul.f32 %v337, 1.442695
        %v346 = vpow.pop %v345
        %v347 = vmul.f32 %v338, 1.442695
        %v348 = vpow.pop %v347
        %v349 = vmul.f32 %v339, 1.442695
        %v350 = vpow.pop %v349
        %v351 = vmul.f32 %v340, 1.442695
        %v352 = vpow.pop %v351
        %v353 = vld [vmem:[%s1] sm:$0xff]
        %vm354 = vcmask 523264
        %v356 = vsel %vm354, %v353, 0
        %v358 = vand.u32 %v227, 4294901760
        %359 = vmatprep.subr.mxu0 %v358
        %v360 = vand.u32 %v225, 4294901760
        %361 = vmatpush1.msra.mxu0 %v360
        %v362 = vand.u32 %v233, 4294901760
        %363 = vmatprep.subr.mxu0 %v362
        %v364 = vand.u32 %v231, 4294901760
        %365 = vmatpush1.msra.mxu0 %v364
        %v366 = vand.u32 %v266, 4294901760
        %367 = vmatprep.subr.mxu0 %v366
        %v368 = vand.u32 %v264, 4294901760
        %369 = vmatpush1.msra.mxu0 %v368
        %v370 = vand.u32 %v272, 4294901760
        %371 = vmatprep.subr.mxu0 %v370
        %v372 = vand.u32 %v270, 4294901760
        %373 = vmatpush1.msra.mxu0 %v372
        %v374 = vand.u32 %v305, 4294901760
        %375 = vmatprep.subr.mxu0 %v374
        %v376 = vand.u32 %v303, 4294901760
        %377 = vmatpush1.msra.mxu0 %v376
        %v378 = vand.u32 %v311, 4294901760
        %379 = vmatprep.subr.mxu0 %v378
        %v380 = vand.u32 %v309, 4294901760
        %381 = vmatpush1.msra.mxu0 %v380
        %v382 = vand.u32 %v344, 4294901760
        %383 = vmatprep.subr.mxu0 %v382
        %v384 = vand.u32 %v342, 4294901760
        %385 = vmatpush1.msra.mxu0 %v384
        %v386 = vand.u32 %v350, 4294901760
        %387 = vmatprep.subr.mxu0 %v386
        %v388 = vand.u32 %v348, 4294901760
        %389 = vmatpush1.msra.mxu0 %v388
        %390 = vmatprep.subr.mxu0 0.0
        %391 = vmatpush1.msra.mxu0 0.0
        %392 = vmatprep.subr.mxu0 0.0
        %393 = vmatpush1.msra.mxu0 0.0
        %394 = vmatprep.subr.mxu0 0.0
        %395 = vmatpush1.msra.mxu0 0.0
        %396 = vmatprep.subr.mxu0 0.0
        %397 = vmatpush1.msra.mxu0 0.0
        %398 = vmatprep.subr.mxu0 0.0
        %399 = vmatpush1.msra.mxu0 0.0
        %400 = vmatprep.subr.mxu0 0.0
        %401 = vmatpush1.msra.mxu0 0.0
        %402 = vmatprep.subr.mxu0 0.0
        %403 = vmatpush1.msra.mxu0 0.0
        %404 = vmatprep.subr.mxu0 0.0
        %405 = vmatpush1.msra.mxu0 0.0
        %406 = vmatprep.subr.mxu0 0.0
        %407 = vmatpush1.msra.mxu0 0.0
        %408 = vmatprep.subr.mxu0 0.0
        %409 = vmatpush1.msra.mxu0 0.0
        %410 = vmatprep.subr.mxu0 0.0
        %411 = vmatpush1.msra.mxu0 0.0
        %412 = vmatprep.subr.mxu0 0.0
        %413 = vmatpush1.msra.mxu0 0.0
        %414 = vmatprep.subr.mxu0 0.0
        %415 = vmatpush1.msra.mxu0 0.0
        %416 = vmatprep.subr.mxu0 0.0
        %417 = vmatpush1.msra.mxu0 0.0
        %418 = vmatprep.subr.mxu0 0.0
        %419 = vmatpush1.msra.mxu0 0.0
        %420 = vmatprep.subr.mxu0 0.0
        %421 = vmatpush1.msra.mxu0 0.0
        %422 = vmatprep.subr.mxu0 0.0
        %423 = vmatpush1.msra.mxu0 0.0
        %424 = vmatprep.subr.mxu0 0.0
        %425 = vmatpush1.msra.mxu0 0.0
        %426 = vmatprep.subr.mxu0 0.0
        %427 = vmatpush1.msra.mxu0 0.0
        %428 = vmatprep.subr.mxu0 0.0
        %429 = vmatpush1.msra.mxu0 0.0
        %430 = vmatprep.subr.mxu0 0.0
        %431 = vmatpush1.msra.mxu0 0.0
        %432 = vmatprep.subr.mxu0 0.0
        %433 = vmatpush1.msra.mxu0 0.0
        %434 = vmatprep.subr.mxu0 0.0
        %435 = vmatpush1.msra.mxu0 0.0
        %436 = vmatprep.subr.mxu0 0.0
        %437 = vmatpush1.msra.mxu0 0.0
        %438 = vmatprep.mubr.f32.mxu0 0.0
        %v439 = vand.u32 %v356, 4294901760
        %v440 = vsub.f32 %v356, %v439
        %v441 = vand.u32 %v440, 4294901760
        %v442 = vsub.f32 %v440, %v441
        %v443 = vand.u32 %v442, 4294901760
        %444 = vmatmul.mubr.f32.gmra.mrb[0].mxu0 %v443
        %v445 = vpop.f32.mrb[0].mxu0
        %v446 = vadd.f32 0.0, %v445
        %v447 = vpop.f32.mrb[0].mxu0
        %v448 = vadd.f32 0.0, %v447
        %449 = vdwg.mxu0
        %v450 = vand.u32 %v227, 4294901760
        %v451 = vsub.f32 %v227, %v450
        %v452 = vand.u32 %v451, 4294901760
        %v453 = vsub.f32 %v451, %v452
        %v454 = vand.u32 %v453, 4294901760
        %455 = vmatprep.subr.mxu0 %v454
        %v456 = vand.u32 %v225, 4294901760
        %v457 = vsub.f32 %v225, %v456
        %v458 = vand.u32 %v457, 4294901760
        %v459 = vsub.f32 %v457, %v458
        %v460 = vand.u32 %v459, 4294901760
        %461 = vmatpush1.msra.mxu0 %v460
        %v462 = vand.u32 %v233, 4294901760
        %v463 = vsub.f32 %v233, %v462
        %v464 = vand.u32 %v463, 4294901760
        %v465 = vsub.f32 %v463, %v464
        %v466 = vand.u32 %v465, 4294901760
        %467 = vmatprep.subr.mxu0 %v466
        %v468 = vand.u32 %v231, 4294901760
        %v469 = vsub.f32 %v231, %v468
        %v470 = vand.u32 %v469, 4294901760
        %v471 = vsub.f32 %v469, %v470
        %v472 = vand.u32 %v471, 4294901760
        %473 = vmatpush1.msra.mxu0 %v472
        %v474 = vand.u32 %v266, 4294901760
        %v475 = vsub.f32 %v266, %v474
        %v476 = vand.u32 %v475, 4294901760
        %v477 = vsub.f32 %v475, %v476
        %v478 = vand.u32 %v477, 4294901760
        %479 = vmatprep.subr.mxu0 %v478
        %v480 = vand.u32 %v264, 4294901760
        %v481 = vsub.f32 %v264, %v480
        %v482 = vand.u32 %v481, 4294901760
        %v483 = vsub.f32 %v481, %v482
        %v484 = vand.u32 %v483, 4294901760
        %485 = vmatpush1.msra.mxu0 %v484
        %v486 = vand.u32 %v272, 4294901760
        %v487 = vsub.f32 %v272, %v486
        %v488 = vand.u32 %v487, 4294901760
        %v489 = vsub.f32 %v487, %v488
        %v490 = vand.u32 %v489, 4294901760
        %491 = vmatprep.subr.mxu0 %v490
        %v492 = vand.u32 %v270, 4294901760
        %v493 = vsub.f32 %v270, %v492
        %v494 = vand.u32 %v493, 4294901760
        %v495 = vsub.f32 %v493, %v494
        %v496 = vand.u32 %v495, 4294901760
        %497 = vmatpush1.msra.mxu0 %v496
        %v498 = vand.u32 %v305, 4294901760
        %v499 = vsub.f32 %v305, %v498
        %v500 = vand.u32 %v499, 4294901760
        %v501 = vsub.f32 %v499, %v500
        %v502 = vand.u32 %v501, 4294901760
        %503 = vmatprep.subr.mxu0 %v502
        %v504 = vand.u32 %v303, 4294901760
        %v505 = vsub.f32 %v303, %v504
        %v506 = vand.u32 %v505, 4294901760
        %v507 = vsub.f32 %v505, %v506
        %v508 = vand.u32 %v507, 4294901760
        %509 = vmatpush1.msra.mxu0 %v508
        %v510 = vand.u32 %v311, 4294901760
        %v511 = vsub.f32 %v311, %v510
        %v512 = vand.u32 %v511, 4294901760
        %v513 = vsub.f32 %v511, %v512
        %v514 = vand.u32 %v513, 4294901760
        %515 = vmatprep.subr.mxu0 %v514
        %v516 = vand.u32 %v309, 4294901760
        %v517 = vsub.f32 %v309, %v516
        %v518 = vand.u32 %v517, 4294901760
        %v519 = vsub.f32 %v517, %v518
        %v520 = vand.u32 %v519, 4294901760
        %521 = vmatpush1.msra.mxu0 %v520
        %v522 = vand.u32 %v344, 4294901760
        %v523 = vsub.f32 %v344, %v522
        %v524 = vand.u32 %v523, 4294901760
        %v525 = vsub.f32 %v523, %v524
        %v526 = vand.u32 %v525, 4294901760
        %527 = vmatprep.subr.mxu0 %v526
        %v528 = vand.u32 %v342, 4294901760
        %v529 = vsub.f32 %v342, %v528
        %v530 = vand.u32 %v529, 4294901760
        %v531 = vsub.f32 %v529, %v530
        %v532 = vand.u32 %v531, 4294901760
        %533 = vmatpush1.msra.mxu0 %v532
        %v534 = vand.u32 %v350, 4294901760
        %v535 = vsub.f32 %v350, %v534
        %v536 = vand.u32 %v535, 4294901760
        %v537 = vsub.f32 %v535, %v536
        %v538 = vand.u32 %v537, 4294901760
        %539 = vmatprep.subr.mxu0 %v538
        %v540 = vand.u32 %v348, 4294901760
        %v541 = vsub.f32 %v348, %v540
        %v542 = vand.u32 %v541, 4294901760
        %v543 = vsub.f32 %v541, %v542
        %v544 = vand.u32 %v543, 4294901760
        %545 = vmatpush1.msra.mxu0 %v544
        %546 = vmatprep.subr.mxu0 0.0
        %547 = vmatpush1.msra.mxu0 0.0
        %548 = vmatprep.subr.mxu0 0.0
        %549 = vmatpush1.msra.mxu0 0.0
        %550 = vmatprep.subr.mxu0 0.0
        %551 = vmatpush1.msra.mxu0 0.0
        %552 = vmatprep.subr.mxu0 0.0
        %553 = vmatpush1.msra.mxu0 0.0
        %554 = vmatprep.subr.mxu0 0.0
        %555 = vmatpush1.msra.mxu0 0.0
        %556 = vmatprep.subr.mxu0 0.0
        %557 = vmatpush1.msra.mxu0 0.0
        %558 = vmatprep.subr.mxu0 0.0
        %559 = vmatpush1.msra.mxu0 0.0
        %560 = vmatprep.subr.mxu0 0.0
        %561 = vmatpush1.msra.mxu0 0.0
        %562 = vmatprep.subr.mxu0 0.0
        %563 = vmatpush1.msra.mxu0 0.0
        %564 = vmatprep.subr.mxu0 0.0
        %565 = vmatpush1.msra.mxu0 0.0
        %566 = vmatprep.subr.mxu0 0.0
        %567 = vmatpush1.msra.mxu0 0.0
        %568 = vmatprep.subr.mxu0 0.0
        %569 = vmatpush1.msra.mxu0 0.0
        %570 = vmatprep.subr.mxu0 0.0
        %571 = vmatpush1.msra.mxu0 0.0
        %572 = vmatprep.subr.mxu0 0.0
        %573 = vmatpush1.msra.mxu0 0.0
        %574 = vmatprep.subr.mxu0 0.0
        %575 = vmatpush1.msra.mxu0 0.0
        %576 = vmatprep.subr.mxu0 0.0
        %577 = vmatpush1.msra.mxu0 0.0
        %578 = vmatprep.subr.mxu0 0.0
        %579 = vmatpush1.msra.mxu0 0.0
        %580 = vmatprep.subr.mxu0 0.0
        %581 = vmatpush1.msra.mxu0 0.0
        %582 = vmatprep.subr.mxu0 0.0
        %583 = vmatpush1.msra.mxu0 0.0
        %584 = vmatprep.subr.mxu0 0.0
        %585 = vmatpush1.msra.mxu0 0.0
        %586 = vmatprep.subr.mxu0 0.0
        %587 = vmatpush1.msra.mxu0 0.0
        %588 = vmatprep.subr.mxu0 0.0
        %589 = vmatpush1.msra.mxu0 0.0
        %590 = vmatprep.subr.mxu0 0.0
        %591 = vmatpush1.msra.mxu0 0.0
        %592 = vmatprep.subr.mxu0 0.0
        %593 = vmatpush1.msra.mxu0 0.0
        %594 = vmatprep.mubr.f32.mxu0 0.0
        %v595 = vand.u32 %v356, 4294901760
        %596 = vmatmul.mubr.f32.gmra.mrb[0].mxu0 %v595
        %v597 = vpop.f32.mrb[0].mxu0
        %v598 = vadd.f32 %v446, %v597
        %v599 = vpop.f32.mrb[0].mxu0
        %v600 = vadd.f32 %v448, %v599
        %601 = vdwg.mxu0
        %v602 = vand.u32 %v227, 4294901760
        %v603 = vsub.f32 %v227, %v602
        %604 = vmatprep.subr.mxu0 %v603
        %v605 = vand.u32 %v225, 4294901760
        %v606 = vsub.f32 %v225, %v605
        %607 = vmatpush1.msra.mxu0 %v606
        %v608 = vand.u32 %v233, 4294901760
        %v609 = vsub.f32 %v233, %v608
        %610 = vmatprep.subr.mxu0 %v609
        %v611 = vand.u32 %v231, 4294901760
        %v612 = vsub.f32 %v231, %v611
        %613 = vmatpush1.msra.mxu0 %v612
        %v614 = vand.u32 %v266, 4294901760
        %v615 = vsub.f32 %v266, %v614
        %616 = vmatprep.subr.mxu0 %v615
        %v617 = vand.u32 %v264, 4294901760
        %v618 = vsub.f32 %v264, %v617
        %619 = vmatpush1.msra.mxu0 %v618
        %v620 = vand.u32 %v272, 4294901760
        %v621 = vsub.f32 %v272, %v620
        %622 = vmatprep.subr.mxu0 %v621
        %v623 = vand.u32 %v270, 4294901760
        %v624 = vsub.f32 %v270, %v623
        %625 = vmatpush1.msra.mxu0 %v624
        %v626 = vand.u32 %v305, 4294901760
        %v627 = vsub.f32 %v305, %v626
        %628 = vmatprep.subr.mxu0 %v627
        %v629 = vand.u32 %v303, 4294901760
        %v630 = vsub.f32 %v303, %v629
        %631 = vmatpush1.msra.mxu0 %v630
        %v632 = vand.u32 %v311, 4294901760
        %v633 = vsub.f32 %v311, %v632
        %634 = vmatprep.subr.mxu0 %v633
        %v635 = vand.u32 %v309, 4294901760
        %v636 = vsub.f32 %v309, %v635
        %637 = vmatpush1.msra.mxu0 %v636
        %v638 = vand.u32 %v344, 4294901760
        %v639 = vsub.f32 %v344, %v638
        %640 = vmatprep.subr.mxu0 %v639
        %v641 = vand.u32 %v342, 4294901760
        %v642 = vsub.f32 %v342, %v641
        %643 = vmatpush1.msra.mxu0 %v642
        %v644 = vand.u32 %v350, 4294901760
        %v645 = vsub.f32 %v350, %v644
        %646 = vmatprep.subr.mxu0 %v645
        %v647 = vand.u32 %v348, 4294901760
        %v648 = vsub.f32 %v348, %v647
        %649 = vmatpush1.msra.mxu0 %v648
        %650 = vmatprep.subr.mxu0 0.0
        %651 = vmatpush1.msra.mxu0 0.0
        %652 = vmatprep.subr.mxu0 0.0
        %653 = vmatpush1.msra.mxu0 0.0
        %654 = vmatprep.subr.mxu0 0.0
        %655 = vmatpush1.msra.mxu0 0.0
        %656 = vmatprep.subr.mxu0 0.0
        %657 = vmatpush1.msra.mxu0 0.0
        %658 = vmatprep.subr.mxu0 0.0
        %659 = vmatpush1.msra.mxu0 0.0
        %660 = vmatprep.subr.mxu0 0.0
        %661 = vmatpush1.msra.mxu0 0.0
        %662 = vmatprep.subr.mxu0 0.0
        %663 = vmatpush1.msra.mxu0 0.0
        %664 = vmatprep.subr.mxu0 0.0
        %665 = vmatpush1.msra.mxu0 0.0
        %666 = vmatprep.subr.mxu0 0.0
        %667 = vmatpush1.msra.mxu0 0.0
        %668 = vmatprep.subr.mxu0 0.0
        %669 = vmatpush1.msra.mxu0 0.0
        %670 = vmatprep.subr.mxu0 0.0
        %671 = vmatpush1.msra.mxu0 0.0
        %672 = vmatprep.subr.mxu0 0.0
        %673 = vmatpush1.msra.mxu0 0.0
        %674 = vmatprep.subr.mxu0 0.0
        %675 = vmatpush1.msra.mxu0 0.0
        %676 = vmatprep.subr.mxu0 0.0
        %677 = vmatpush1.msra.mxu0 0.0
        %678 = vmatprep.subr.mxu0 0.0
        %679 = vmatpush1.msra.mxu0 0.0
        %680 = vmatprep.subr.mxu0 0.0
        %681 = vmatpush1.msra.mxu0 0.0
        %682 = vmatprep.subr.mxu0 0.0
        %683 = vmatpush1.msra.mxu0 0.0
        %684 = vmatprep.subr.mxu0 0.0
        %685 = vmatpush1.msra.mxu0 0.0
        %686 = vmatprep.subr.mxu0 0.0
        %687 = vmatpush1.msra.mxu0 0.0
        %688 = vmatprep.subr.mxu0 0.0
        %689 = vmatpush1.msra.mxu0 0.0
        %690 = vmatprep.subr.mxu0 0.0
        %691 = vmatpush1.msra.mxu0 0.0
        %692 = vmatprep.subr.mxu0 0.0
        %693 = vmatpush1.msra.mxu0 0.0
        %694 = vmatprep.subr.mxu0 0.0
        %695 = vmatpush1.msra.mxu0 0.0
        %696 = vmatprep.subr.mxu0 0.0
        %697 = vmatpush1.msra.mxu0 0.0
        %698 = vmatprep.mubr.f32.mxu0 0.0
        %v699 = vand.u32 %v356, 4294901760
        %v700 = vsub.f32 %v356, %v699
        %701 = vmatmul.mubr.f32.gmra.mrb[0].mxu0 %v700
        %v702 = vpop.f32.mrb[0].mxu0
        %v703 = vadd.f32 %v598, %v702
        %v704 = vpop.f32.mrb[0].mxu0
        %v705 = vadd.f32 %v600, %v704
        %706 = vdwg.mxu0
        %v707 = vand.u32 %v227, 4294901760
        %708 = vmatprep.subr.mxu0 %v707
        %v709 = vand.u32 %v225, 4294901760
        %710 = vmatpush1.msra.mxu0 %v709
        %v711 = vand.u32 %v233, 4294901760
        %712 = vmatprep.subr.mxu0 %v711
        %v713 = vand.u32 %v231, 4294901760
        %714 = vmatpush1.msra.mxu0 %v713
        %v715 = vand.u32 %v266, 4294901760
        %716 = vmatprep.subr.mxu0 %v715
        %v717 = vand.u32 %v264, 4294901760
        %718 = vmatpush1.msra.mxu0 %v717
        %v719 = vand.u32 %v272, 4294901760
        %720 = vmatprep.subr.mxu0 %v719
        %v721 = vand.u32 %v270, 4294901760
        %722 = vmatpush1.msra.mxu0 %v721
        %v723 = vand.u32 %v305, 4294901760
        %724 = vmatprep.subr.mxu0 %v723
        %v725 = vand.u32 %v303, 4294901760
        %726 = vmatpush1.msra.mxu0 %v725
        %v727 = vand.u32 %v311, 4294901760
        %728 = vmatprep.subr.mxu0 %v727
        %v729 = vand.u32 %v309, 4294901760
        %730 = vmatpush1.msra.mxu0 %v729
        %v731 = vand.u32 %v344, 4294901760
        %732 = vmatprep.subr.mxu0 %v731
        %v733 = vand.u32 %v342, 4294901760
        %734 = vmatpush1.msra.mxu0 %v733
        %v735 = vand.u32 %v350, 4294901760
        %736 = vmatprep.subr.mxu0 %v735
        %v737 = vand.u32 %v348, 4294901760
        %738 = vmatpush1.msra.mxu0 %v737
        %739 = vmatprep.subr.mxu0 0.0
        %740 = vmatpush1.msra.mxu0 0.0
        %741 = vmatprep.subr.mxu0 0.0
        %742 = vmatpush1.msra.mxu0 0.0
        %743 = vmatprep.subr.mxu0 0.0
        %744 = vmatpush1.msra.mxu0 0.0
        %745 = vmatprep.subr.mxu0 0.0
        %746 = vmatpush1.msra.mxu0 0.0
        %747 = vmatprep.subr.mxu0 0.0
        %748 = vmatpush1.msra.mxu0 0.0
        %749 = vmatprep.subr.mxu0 0.0
        %750 = vmatpush1.msra.mxu0 0.0
        %751 = vmatprep.subr.mxu0 0.0
        %752 = vmatpush1.msra.mxu0 0.0
        %753 = vmatprep.subr.mxu0 0.0
        %754 = vmatpush1.msra.mxu0 0.0
        %755 = vmatprep.subr.mxu0 0.0
        %756 = vmatpush1.msra.mxu0 0.0
        %757 = vmatprep.subr.mxu0 0.0
        %758 = vmatpush1.msra.mxu0 0.0
        %759 = vmatprep.subr.mxu0 0.0
        %760 = vmatpush1.msra.mxu0 0.0
        %761 = vmatprep.subr.mxu0 0.0
        %762 = vmatpush1.msra.mxu0 0.0
        %763 = vmatprep.subr.mxu0 0.0
        %764 = vmatpush1.msra.mxu0 0.0
        %765 = vmatprep.subr.mxu0 0.0
        %766 = vmatpush1.msra.mxu0 0.0
        %767 = vmatprep.subr.mxu0 0.0
        %768 = vmatpush1.msra.mxu0 0.0
        %769 = vmatprep.subr.mxu0 0.0
        %770 = vmatpush1.msra.mxu0 0.0
        %771 = vmatprep.subr.mxu0 0.0
        %772 = vmatpush1.msra.mxu0 0.0
        %773 = vmatprep.subr.mxu0 0.0
        %774 = vmatpush1.msra.mxu0 0.0
        %775 = vmatprep.subr.mxu0 0.0
        %776 = vmatpush1.msra.mxu0 0.0
        %777 = vmatprep.subr.mxu0 0.0
        %778 = vmatpush1.msra.mxu0 0.0
        %779 = vmatprep.subr.mxu0 0.0
        %780 = vmatpush1.msra.mxu0 0.0
        %781 = vmatprep.subr.mxu0 0.0
        %782 = vmatpush1.msra.mxu0 0.0
        %783 = vmatprep.subr.mxu0 0.0
        %784 = vmatpush1.msra.mxu0 0.0
        %785 = vmatprep.subr.mxu0 0.0
        %786 = vmatpush1.msra.mxu0 0.0
        %787 = vmatprep.mubr.f32.mxu0 0.0
        %v788 = vand.u32 %v356, 4294901760
        %v789 = vsub.f32 %v356, %v788
        %v790 = vand.u32 %v789, 4294901760
        %791 = vmatmul.mubr.f32.gmra.mrb[0].mxu0 %v790
        %v792 = vpop.f32.mrb[0].mxu0
        %v793 = vadd.f32 %v703, %v792
        %v794 = vpop.f32.mrb[0].mxu0
        %v795 = vadd.f32 %v705, %v794
        %796 = vdwg.mxu0
        %v797 = vand.u32 %v227, 4294901760
        %v798 = vsub.f32 %v227, %v797
        %v799 = vand.u32 %v798, 4294901760
        %800 = vmatprep.subr.mxu0 %v799
        %v801 = vand.u32 %v225, 4294901760
        %v802 = vsub.f32 %v225, %v801
        %v803 = vand.u32 %v802, 4294901760
        %804 = vmatpush1.msra.mxu0 %v803
        %v805 = vand.u32 %v233, 4294901760
        %v806 = vsub.f32 %v233, %v805
        %v807 = vand.u32 %v806, 4294901760
        %808 = vmatprep.subr.mxu0 %v807
        %v809 = vand.u32 %v231, 4294901760
        %v810 = vsub.f32 %v231, %v809
        %v811 = vand.u32 %v810, 4294901760
        %812 = vmatpush1.msra.mxu0 %v811
        %v813 = vand.u32 %v266, 4294901760
        %v814 = vsub.f32 %v266, %v813
        %v815 = vand.u32 %v814, 4294901760
        %816 = vmatprep.subr.mxu0 %v815
        %v817 = vand.u32 %v264, 4294901760
        %v818 = vsub.f32 %v264, %v817
        %v819 = vand.u32 %v818, 4294901760
        %820 = vmatpush1.msra.mxu0 %v819
        %v821 = vand.u32 %v272, 4294901760
        %v822 = vsub.f32 %v272, %v821
        %v823 = vand.u32 %v822, 4294901760
        %824 = vmatprep.subr.mxu0 %v823
        %v825 = vand.u32 %v270, 4294901760
        %v826 = vsub.f32 %v270, %v825
        %v827 = vand.u32 %v826, 4294901760
        %828 = vmatpush1.msra.mxu0 %v827
        %v829 = vand.u32 %v305, 4294901760
        %v830 = vsub.f32 %v305, %v829
        %v831 = vand.u32 %v830, 4294901760
        %832 = vmatprep.subr.mxu0 %v831
        %v833 = vand.u32 %v303, 4294901760
        %v834 = vsub.f32 %v303, %v833
        %v835 = vand.u32 %v834, 4294901760
        %836 = vmatpush1.msra.mxu0 %v835
        %v837 = vand.u32 %v311, 4294901760
        %v838 = vsub.f32 %v311, %v837
        %v839 = vand.u32 %v838, 4294901760
        %840 = vmatprep.subr.mxu0 %v839
        %v841 = vand.u32 %v309, 4294901760
        %v842 = vsub.f32 %v309, %v841
        %v843 = vand.u32 %v842, 4294901760
        %844 = vmatpush1.msra.mxu0 %v843
        %v845 = vand.u32 %v344, 4294901760
        %v846 = vsub.f32 %v344, %v845
        %v847 = vand.u32 %v846, 4294901760
        %848 = vmatprep.subr.mxu0 %v847
        %v849 = vand.u32 %v342, 4294901760
        %v850 = vsub.f32 %v342, %v849
        %v851 = vand.u32 %v850, 4294901760
        %852 = vmatpush1.msra.mxu0 %v851
        %v853 = vand.u32 %v350, 4294901760
        %v854 = vsub.f32 %v350, %v853
        %v855 = vand.u32 %v854, 4294901760
        %856 = vmatprep.subr.mxu0 %v855
        %v857 = vand.u32 %v348, 4294901760
        %v858 = vsub.f32 %v348, %v857
        %v859 = vand.u32 %v858, 4294901760
        %860 = vmatpush1.msra.mxu0 %v859
        %861 = vmatprep.subr.mxu0 0.0
        %862 = vmatpush1.msra.mxu0 0.0
        %863 = vmatprep.subr.mxu0 0.0
        %864 = vmatpush1.msra.mxu0 0.0
        %865 = vmatprep.subr.mxu0 0.0
        %866 = vmatpush1.msra.mxu0 0.0
        %867 = vmatprep.subr.mxu0 0.0
        %868 = vmatpush1.msra.mxu0 0.0
        %869 = vmatprep.subr.mxu0 0.0
        %870 = vmatpush1.msra.mxu0 0.0
        %871 = vmatprep.subr.mxu0 0.0
        %872 = vmatpush1.msra.mxu0 0.0
        %873 = vmatprep.subr.mxu0 0.0
        %874 = vmatpush1.msra.mxu0 0.0
        %875 = vmatprep.subr.mxu0 0.0
        %876 = vmatpush1.msra.mxu0 0.0
        %877 = vmatprep.subr.mxu0 0.0
        %878 = vmatpush1.msra.mxu0 0.0
        %879 = vmatprep.subr.mxu0 0.0
        %880 = vmatpush1.msra.mxu0 0.0
        %881 = vmatprep.subr.mxu0 0.0
        %882 = vmatpush1.msra.mxu0 0.0
        %883 = vmatprep.subr.mxu0 0.0
        %884 = vmatpush1.msra.mxu0 0.0
        %885 = vmatprep.subr.mxu0 0.0
        %886 = vmatpush1.msra.mxu0 0.0
        %887 = vmatprep.subr.mxu0 0.0
        %888 = vmatpush1.msra.mxu0 0.0
        %889 = vmatprep.subr.mxu0 0.0
        %890 = vmatpush1.msra.mxu0 0.0
        %891 = vmatprep.subr.mxu0 0.0
        %892 = vmatpush1.msra.mxu0 0.0
        %893 = vmatprep.subr.mxu0 0.0
        %894 = vmatpush1.msra.mxu0 0.0
        %895 = vmatprep.subr.mxu0 0.0
        %896 = vmatpush1.msra.mxu0 0.0
        %897 = vmatprep.subr.mxu0 0.0
        %898 = vmatpush1.msra.mxu0 0.0
        %899 = vmatprep.subr.mxu0 0.0
        %900 = vmatpush1.msra.mxu0 0.0
        %901 = vmatprep.subr.mxu0 0.0
        %902 = vmatpush1.msra.mxu0 0.0
        %903 = vmatprep.subr.mxu0 0.0
        %904 = vmatpush1.msra.mxu0 0.0
        %905 = vmatprep.subr.mxu0 0.0
        %906 = vmatpush1.msra.mxu0 0.0
        %907 = vmatprep.subr.mxu0 0.0
        %908 = vmatpush1.msra.mxu0 0.0
        %909 = vmatprep.mubr.f32.mxu0 0.0
        %v910 = vand.u32 %v356, 4294901760
        %911 = vmatmul.mubr.f32.gmra.mrb[0].mxu0 %v910
        %v912 = vpop.f32.mrb[0].mxu0
        %v913 = vadd.f32 %v793, %v912
        %v914 = vpop.f32.mrb[0].mxu0
        %v915 = vadd.f32 %v795, %v914
        %916 = vdwg.mxu0
        %v917 = vand.u32 %v227, 4294901760
        %918 = vmatprep.subr.mxu0 %v917
        %v919 = vand.u32 %v225, 4294901760
        %920 = vmatpush1.msra.mxu0 %v919
        %v921 = vand.u32 %v233, 4294901760
        %922 = vmatprep.subr.mxu0 %v921
        %v923 = vand.u32 %v231, 4294901760
        %924 = vmatpush1.msra.mxu0 %v923
        %v925 = vand.u32 %v266, 4294901760
        %926 = vmatprep.subr.mxu0 %v925
        %v927 = vand.u32 %v264, 4294901760
        %928 = vmatpush1.msra.mxu0 %v927
        %v929 = vand.u32 %v272, 4294901760
        %930 = vmatprep.subr.mxu0 %v929
        %v931 = vand.u32 %v270, 4294901760
        %932 = vmatpush1.msra.mxu0 %v931
        %v933 = vand.u32 %v305, 4294901760
        %934 = vmatprep.subr.mxu0 %v933
        %v935 = vand.u32 %v303, 4294901760
        %936 = vmatpush1.msra.mxu0 %v935
        %v937 = vand.u32 %v311, 4294901760
        %938 = vmatprep.subr.mxu0 %v937
        %v939 = vand.u32 %v309, 4294901760
        %940 = vmatpush1.msra.mxu0 %v939
        %v941 = vand.u32 %v344, 4294901760
        %942 = vmatprep.subr.mxu0 %v941
        %v943 = vand.u32 %v342, 4294901760
        %944 = vmatpush1.msra.mxu0 %v943
        %v945 = vand.u32 %v350, 4294901760
        %946 = vmatprep.subr.mxu0 %v945
        %v947 = vand.u32 %v348, 4294901760
        %948 = vmatpush1.msra.mxu0 %v947
        %949 = vmatprep.subr.mxu0 0.0
        %950 = vmatpush1.msra.mxu0 0.0
        %951 = vmatprep.subr.mxu0 0.0
        %952 = vmatpush1.msra.mxu0 0.0
        %953 = vmatprep.subr.mxu0 0.0
        %954 = vmatpush1.msra.mxu0 0.0
        %955 = vmatprep.subr.mxu0 0.0
        %956 = vmatpush1.msra.mxu0 0.0
        %957 = vmatprep.subr.mxu0 0.0
        %958 = vmatpush1.msra.mxu0 0.0
        %959 = vmatprep.subr.mxu0 0.0
        %960 = vmatpush1.msra.mxu0 0.0
        %961 = vmatprep.subr.mxu0 0.0
        %962 = vmatpush1.msra.mxu0 0.0
        %963 = vmatprep.subr.mxu0 0.0
        %964 = vmatpush1.msra.mxu0 0.0
        %965 = vmatprep.subr.mxu0 0.0
        %966 = vmatpush1.msra.mxu0 0.0
        %967 = vmatprep.subr.mxu0 0.0
        %968 = vmatpush1.msra.mxu0 0.0
        %969 = vmatprep.subr.mxu0 0.0
        %970 = vmatpush1.msra.mxu0 0.0
        %971 = vmatprep.subr.mxu0 0.0
        %972 = vmatpush1.msra.mxu0 0.0
        %973 = vmatprep.subr.mxu0 0.0
        %974 = vmatpush1.msra.mxu0 0.0
        %975 = vmatprep.subr.mxu0 0.0
        %976 = vmatpush1.msra.mxu0 0.0
        %977 = vmatprep.subr.mxu0 0.0
        %978 = vmatpush1.msra.mxu0 0.0
        %979 = vmatprep.subr.mxu0 0.0
        %980 = vmatpush1.msra.mxu0 0.0
        %981 = vmatprep.subr.mxu0 0.0
        %982 = vmatpush1.msra.mxu0 0.0
        %983 = vmatprep.subr.mxu0 0.0
        %984 = vmatpush1.msra.mxu0 0.0
        %985 = vmatprep.subr.mxu0 0.0
        %986 = vmatpush1.msra.mxu0 0.0
        %987 = vmatprep.subr.mxu0 0.0
        %988 = vmatpush1.msra.mxu0 0.0
        %989 = vmatprep.subr.mxu0 0.0
        %990 = vmatpush1.msra.mxu0 0.0
        %991 = vmatprep.subr.mxu0 0.0
        %992 = vmatpush1.msra.mxu0 0.0
        %993 = vmatprep.subr.mxu0 0.0
        %994 = vmatpush1.msra.mxu0 0.0
        %995 = vmatprep.subr.mxu0 0.0
        %996 = vmatpush1.msra.mxu0 0.0
        %997 = vmatprep.mubr.f32.mxu0 0.0
        %v998 = vand.u32 %v356, 4294901760
        %999 = vmatmul.mubr.f32.gmra.mrb[0].mxu0 %v998
        %v1000 = vpop.f32.mrb[0].mxu0
        %v1001 = vadd.f32 %v913, %v1000
        %v1002 = vpop.f32.mrb[0].mxu0
        %v1003 = vadd.f32 %v915, %v1002
        %1004 = vdwg.mxu0
        %1005 = vmatprep.subr.mxu0 0.0
        %v1006 = vand.u32 %v229, 4294901760
        %1007 = vmatpush1.msra.mxu0 %v1006
        %1008 = vmatprep.subr.mxu0 0.0
        %v1009 = vand.u32 %v235, 4294901760
        %1010 = vmatpush1.msra.mxu0 %v1009
        %1011 = vmatprep.subr.mxu0 0.0
        %v1012 = vand.u32 %v268, 4294901760
        %1013 = vmatpush1.msra.mxu0 %v1012
        %1014 = vmatprep.subr.mxu0 0.0
        %v1015 = vand.u32 %v274, 4294901760
        %1016 = vmatpush1.msra.mxu0 %v1015
        %1017 = vmatprep.subr.mxu0 0.0
        %v1018 = vand.u32 %v307, 4294901760
        %1019 = vmatpush1.msra.mxu0 %v1018
        %1020 = vmatprep.subr.mxu0 0.0
        %v1021 = vand.u32 %v313, 4294901760
        %1022 = vmatpush1.msra.mxu0 %v1021
        %1023 = vmatprep.subr.mxu0 0.0
        %v1024 = vand.u32 %v346, 4294901760
        %1025 = vmatpush1.msra.mxu0 %v1024
        %1026 = vmatprep.subr.mxu0 0.0
        %v1027 = vand.u32 %v352, 4294901760
        %1028 = vmatpush1.msra.mxu0 %v1027
        %1029 = vmatprep.subr.mxu0 0.0
        %1030 = vmatpush1.msra.mxu0 0.0
        %1031 = vmatprep.subr.mxu0 0.0
        %1032 = vmatpush1.msra.mxu0 0.0
        %1033 = vmatprep.subr.mxu0 0.0
        %1034 = vmatpush1.msra.mxu0 0.0
        %1035 = vmatprep.subr.mxu0 0.0
        %1036 = vmatpush1.msra.mxu0 0.0
        %1037 = vmatprep.subr.mxu0 0.0
        %1038 = vmatpush1.msra.mxu0 0.0
        %1039 = vmatprep.subr.mxu0 0.0
        %1040 = vmatpush1.msra.mxu0 0.0
        %1041 = vmatprep.subr.mxu0 0.0
        %1042 = vmatpush1.msra.mxu0 0.0
        %1043 = vmatprep.subr.mxu0 0.0
        %1044 = vmatpush1.msra.mxu0 0.0
        %1045 = vmatprep.subr.mxu0 0.0
        %1046 = vmatpush1.msra.mxu0 0.0
        %1047 = vmatprep.subr.mxu0 0.0
        %1048 = vmatpush1.msra.mxu0 0.0
        %1049 = vmatprep.subr.mxu0 0.0
        %1050 = vmatpush1.msra.mxu0 0.0
        %1051 = vmatprep.subr.mxu0 0.0
        %1052 = vmatpush1.msra.mxu0 0.0
        %1053 = vmatprep.subr.mxu0 0.0
        %1054 = vmatpush1.msra.mxu0 0.0
        %1055 = vmatprep.subr.mxu0 0.0
        %1056 = vmatpush1.msra.mxu0 0.0
        %1057 = vmatprep.subr.mxu0 0.0
        %1058 = vmatpush1.msra.mxu0 0.0
        %1059 = vmatprep.subr.mxu0 0.0
        %1060 = vmatpush1.msra.mxu0 0.0
        %1061 = vmatprep.subr.mxu0 0.0
        %1062 = vmatpush1.msra.mxu0 0.0
        %1063 = vmatprep.subr.mxu0 0.0
        %1064 = vmatpush1.msra.mxu0 0.0
        %1065 = vmatprep.subr.mxu0 0.0
        %1066 = vmatpush1.msra.mxu0 0.0
        %1067 = vmatprep.subr.mxu0 0.0
        %1068 = vmatpush1.msra.mxu0 0.0
        %1069 = vmatprep.subr.mxu0 0.0
        %1070 = vmatpush1.msra.mxu0 0.0
        %1071 = vmatprep.subr.mxu0 0.0
        %1072 = vmatpush1.msra.mxu0 0.0
        %1073 = vmatprep.subr.mxu0 0.0
        %1074 = vmatpush1.msra.mxu0 0.0
        %1075 = vmatprep.subr.mxu0 0.0
        %1076 = vmatpush1.msra.mxu0 0.0
        %1077 = vmatprep.mubr.f32.mxu0 0.0
        %v1078 = vand.u32 %v356, 4294901760
        %v1079 = vsub.f32 %v356, %v1078
        %v1080 = vand.u32 %v1079, 4294901760
        %v1081 = vsub.f32 %v1079, %v1080
        %v1082 = vand.u32 %v1081, 4294901760
        %1083 = vmatmul.mubr.f32.gmra.mrb[0].mxu0 %v1082
        %v1084 = vpop.f32.mrb[0].mxu0
        %v1085 = vadd.f32 0.0, %v1084
        %v1086 = vpop.f32.mrb[0].mxu0
        %1087 = vdwg.mxu0
        %1088 = vmatprep.subr.mxu0 0.0
        %v1089 = vand.u32 %v229, 4294901760
        %v1090 = vsub.f32 %v229, %v1089
        %v1091 = vand.u32 %v1090, 4294901760
        %v1092 = vsub.f32 %v1090, %v1091
        %v1093 = vand.u32 %v1092, 4294901760
        %1094 = vmatpush1.msra.mxu0 %v1093
        %1095 = vmatprep.subr.mxu0 0.0
        %v1096 = vand.u32 %v235, 4294901760
        %v1097 = vsub.f32 %v235, %v1096
        %v1098 = vand.u32 %v1097, 4294901760
        %v1099 = vsub.f32 %v1097, %v1098
        %v1100 = vand.u32 %v1099, 4294901760
        %1101 = vmatpush1.msra.mxu0 %v1100
        %1102 = vmatprep.subr.mxu0 0.0
        %v1103 = vand.u32 %v268, 4294901760
        %v1104 = vsub.f32 %v268, %v1103
        %v1105 = vand.u32 %v1104, 4294901760
        %v1106 = vsub.f32 %v1104, %v1105
        %v1107 = vand.u32 %v1106, 4294901760
        %1108 = vmatpush1.msra.mxu0 %v1107
        %1109 = vmatprep.subr.mxu0 0.0
        %v1110 = vand.u32 %v274, 4294901760
        %v1111 = vsub.f32 %v274, %v1110
        %v1112 = vand.u32 %v1111, 4294901760
        %v1113 = vsub.f32 %v1111, %v1112
        %v1114 = vand.u32 %v1113, 4294901760
        %1115 = vmatpush1.msra.mxu0 %v1114
        %1116 = vmatprep.subr.mxu0 0.0
        %v1117 = vand.u32 %v307, 4294901760
        %v1118 = vsub.f32 %v307, %v1117
        %v1119 = vand.u32 %v1118, 4294901760
        %v1120 = vsub.f32 %v1118, %v1119
        %v1121 = vand.u32 %v1120, 4294901760
        %1122 = vmatpush1.msra.mxu0 %v1121
        %1123 = vmatprep.subr.mxu0 0.0
        %v1124 = vand.u32 %v313, 4294901760
        %v1125 = vsub.f32 %v313, %v1124
        %v1126 = vand.u32 %v1125, 4294901760
        %v1127 = vsub.f32 %v1125, %v1126
        %v1128 = vand.u32 %v1127, 4294901760
        %1129 = vmatpush1.msra.mxu0 %v1128
        %1130 = vmatprep.subr.mxu0 0.0
        %v1131 = vand.u32 %v346, 4294901760
        %v1132 = vsub.f32 %v346, %v1131
        %v1133 = vand.u32 %v1132, 4294901760
        %v1134 = vsub.f32 %v1132, %v1133
        %v1135 = vand.u32 %v1134, 4294901760
        %1136 = vmatpush1.msra.mxu0 %v1135
        %1137 = vmatprep.subr.mxu0 0.0
        %v1138 = vand.u32 %v352, 4294901760
        %v1139 = vsub.f32 %v352, %v1138
        %v1140 = vand.u32 %v1139, 4294901760
        %v1141 = vsub.f32 %v1139, %v1140
        %v1142 = vand.u32 %v1141, 4294901760
        %1143 = vmatpush1.msra.mxu0 %v1142
        %1144 = vmatprep.subr.mxu0 0.0
        %1145 = vmatpush1.msra.mxu0 0.0
        %1146 = vmatprep.subr.mxu0 0.0
        %1147 = vmatpush1.msra.mxu0 0.0
        %1148 = vmatprep.subr.mxu0 0.0
        %1149 = vmatpush1.msra.mxu0 0.0
        %1150 = vmatprep.subr.mxu0 0.0
        %1151 = vmatpush1.msra.mxu0 0.0
        %1152 = vmatprep.subr.mxu0 0.0
        %1153 = vmatpush1.msra.mxu0 0.0
        %1154 = vmatprep.subr.mxu0 0.0
        %1155 = vmatpush1.msra.mxu0 0.0
        %1156 = vmatprep.subr.mxu0 0.0
        %1157 = vmatpush1.msra.mxu0 0.0
        %1158 = vmatprep.subr.mxu0 0.0
        %1159 = vmatpush1.msra.mxu0 0.0
        %1160 = vmatprep.subr.mxu0 0.0
        %1161 = vmatpush1.msra.mxu0 0.0
        %1162 = vmatprep.subr.mxu0 0.0
        %1163 = vmatpush1.msra.mxu0 0.0
        %1164 = vmatprep.subr.mxu0 0.0
        %1165 = vmatpush1.msra.mxu0 0.0
        %1166 = vmatprep.subr.mxu0 0.0
        %1167 = vmatpush1.msra.mxu0 0.0
        %1168 = vmatprep.subr.mxu0 0.0
        %1169 = vmatpush1.msra.mxu0 0.0
        %1170 = vmatprep.subr.mxu0 0.0
        %1171 = vmatpush1.msra.mxu0 0.0
        %1172 = vmatprep.subr.mxu0 0.0
        %1173 = vmatpush1.msra.mxu0 0.0
        %1174 = vmatprep.subr.mxu0 0.0
        %1175 = vmatpush1.msra.mxu0 0.0
        %1176 = vmatprep.subr.mxu0 0.0
        %1177 = vmatpush1.msra.mxu0 0.0
        %1178 = vmatprep.subr.mxu0 0.0
        %1179 = vmatpush1.msra.mxu0 0.0
        %1180 = vmatprep.subr.mxu0 0.0
        %1181 = vmatpush1.msra.mxu0 0.0
        %1182 = vmatprep.subr.mxu0 0.0
        %1183 = vmatpush1.msra.mxu0 0.0
        %1184 = vmatprep.subr.mxu0 0.0
        %1185 = vmatpush1.msra.mxu0 0.0
        %1186 = vmatprep.subr.mxu0 0.0
        %1187 = vmatpush1.msra.mxu0 0.0
        %1188 = vmatprep.subr.mxu0 0.0
        %1189 = vmatpush1.msra.mxu0 0.0
        %1190 = vmatprep.subr.mxu0 0.0
        %1191 = vmatpush1.msra.mxu0 0.0
        %1192 = vmatprep.mubr.f32.mxu0 0.0
        %v1193 = vand.u32 %v356, 4294901760
        %1194 = vmatmul.mubr.f32.gmra.mrb[0].mxu0 %v1193
        %v1195 = vpop.f32.mrb[0].mxu0
        %v1196 = vadd.f32 %v1085, %v1195
        %v1197 = vpop.f32.mrb[0].mxu0
        %1198 = vdwg.mxu0
        %1199 = vmatprep.subr.mxu0 0.0
        %v1200 = vand.u32 %v229, 4294901760
        %v1201 = vsub.f32 %v229, %v1200
        %1202 = vmatpush1.msra.mxu0 %v1201
        %1203 = vmatprep.subr.mxu0 0.0
        %v1204 = vand.u32 %v235, 4294901760
        %v1205 = vsub.f32 %v235, %v1204
        %1206 = vmatpush1.msra.mxu0 %v1205
        %1207 = vmatprep.subr.mxu0 0.0
        %v1208 = vand.u32 %v268, 4294901760
        %v1209 = vsub.f32 %v268, %v1208
        %1210 = vmatpush1.msra.mxu0 %v1209
        %1211 = vmatprep.subr.mxu0 0.0
        %v1212 = vand.u32 %v274, 4294901760
        %v1213 = vsub.f32 %v274, %v1212
        %1214 = vmatpush1.msra.mxu0 %v1213
        %1215 = vmatprep.subr.mxu0 0.0
        %v1216 = vand.u32 %v307, 4294901760
        %v1217 = vsub.f32 %v307, %v1216
        %1218 = vmatpush1.msra.mxu0 %v1217
        %1219 = vmatprep.subr.mxu0 0.0
        %v1220 = vand.u32 %v313, 4294901760
        %v1221 = vsub.f32 %v313, %v1220
        %1222 = vmatpush1.msra.mxu0 %v1221
        %1223 = vmatprep.subr.mxu0 0.0
        %v1224 = vand.u32 %v346, 4294901760
        %v1225 = vsub.f32 %v346, %v1224
        %1226 = vmatpush1.msra.mxu0 %v1225
        %1227 = vmatprep.subr.mxu0 0.0
        %v1228 = vand.u32 %v352, 4294901760
        %v1229 = vsub.f32 %v352, %v1228
        %1230 = vmatpush1.msra.mxu0 %v1229
        %1231 = vmatprep.subr.mxu0 0.0
        %1232 = vmatpush1.msra.mxu0 0.0
        %1233 = vmatprep.subr.mxu0 0.0
        %1234 = vmatpush1.msra.mxu0 0.0
        %1235 = vmatprep.subr.mxu0 0.0
        %1236 = vmatpush1.msra.mxu0 0.0
        %1237 = vmatprep.subr.mxu0 0.0
        %1238 = vmatpush1.msra.mxu0 0.0
        %1239 = vmatprep.subr.mxu0 0.0
        %1240 = vmatpush1.msra.mxu0 0.0
        %1241 = vmatprep.subr.mxu0 0.0
        %1242 = vmatpush1.msra.mxu0 0.0
        %1243 = vmatprep.subr.mxu0 0.0
        %1244 = vmatpush1.msra.mxu0 0.0
        %1245 = vmatprep.subr.mxu0 0.0
        %1246 = vmatpush1.msra.mxu0 0.0
        %1247 = vmatprep.subr.mxu0 0.0
        %1248 = vmatpush1.msra.mxu0 0.0
        %1249 = vmatprep.subr.mxu0 0.0
        %1250 = vmatpush1.msra.mxu0 0.0
        %1251 = vmatprep.subr.mxu0 0.0
        %1252 = vmatpush1.msra.mxu0 0.0
        %1253 = vmatprep.subr.mxu0 0.0
        %1254 = vmatpush1.msra.mxu0 0.0
        %1255 = vmatprep.subr.mxu0 0.0
        %1256 = vmatpush1.msra.mxu0 0.0
        %1257 = vmatprep.subr.mxu0 0.0
        %1258 = vmatpush1.msra.mxu0 0.0
        %1259 = vmatprep.subr.mxu0 0.0
        %1260 = vmatpush1.msra.mxu0 0.0
        %1261 = vmatprep.subr.mxu0 0.0
        %1262 = vmatpush1.msra.mxu0 0.0
        %1263 = vmatprep.subr.mxu0 0.0
        %1264 = vmatpush1.msra.mxu0 0.0
        %1265 = vmatprep.subr.mxu0 0.0
        %1266 = vmatpush1.msra.mxu0 0.0
        %1267 = vmatprep.subr.mxu0 0.0
        %1268 = vmatpush1.msra.mxu0 0.0
        %1269 = vmatprep.subr.mxu0 0.0
        %1270 = vmatpush1.msra.mxu0 0.0
        %1271 = vmatprep.subr.mxu0 0.0
        %1272 = vmatpush1.msra.mxu0 0.0
        %1273 = vmatprep.subr.mxu0 0.0
        %1274 = vmatpush1.msra.mxu0 0.0
        %1275 = vmatprep.subr.mxu0 0.0
        %1276 = vmatpush1.msra.mxu0 0.0
        %1277 = vmatprep.subr.mxu0 0.0
        %1278 = vmatpush1.msra.mxu0 0.0
        %1279 = vmatprep.mubr.f32.mxu0 0.0
        %v1280 = vand.u32 %v356, 4294901760
        %v1281 = vsub.f32 %v356, %v1280
        %1282 = vmatmul.mubr.f32.gmra.mrb[0].mxu0 %v1281
        %v1283 = vpop.f32.mrb[0].mxu0
        %v1284 = vadd.f32 %v1196, %v1283
        %v1285 = vpop.f32.mrb[0].mxu0
        %1286 = vdwg.mxu0
        %1287 = vmatprep.subr.mxu0 0.0
        %v1288 = vand.u32 %v229, 4294901760
        %1289 = vmatpush1.msra.mxu0 %v1288
        %1290 = vmatprep.subr.mxu0 0.0
        %v1291 = vand.u32 %v235, 4294901760
        %1292 = vmatpush1.msra.mxu0 %v1291
        %1293 = vmatprep.subr.mxu0 0.0
        %v1294 = vand.u32 %v268, 4294901760
        %1295 = vmatpush1.msra.mxu0 %v1294
        %1296 = vmatprep.subr.mxu0 0.0
        %v1297 = vand.u32 %v274, 4294901760
        %1298 = vmatpush1.msra.mxu0 %v1297
        %1299 = vmatprep.subr.mxu0 0.0
        %v1300 = vand.u32 %v307, 4294901760
        %1301 = vmatpush1.msra.mxu0 %v1300
        %1302 = vmatprep.subr.mxu0 0.0
        %v1303 = vand.u32 %v313, 4294901760
        %1304 = vmatpush1.msra.mxu0 %v1303
        %1305 = vmatprep.subr.mxu0 0.0
        %v1306 = vand.u32 %v346, 4294901760
        %1307 = vmatpush1.msra.mxu0 %v1306
        %1308 = vmatprep.subr.mxu0 0.0
        %v1309 = vand.u32 %v352, 4294901760
        %1310 = vmatpush1.msra.mxu0 %v1309
        %1311 = vmatprep.subr.mxu0 0.0
        %1312 = vmatpush1.msra.mxu0 0.0
        %1313 = vmatprep.subr.mxu0 0.0
        %1314 = vmatpush1.msra.mxu0 0.0
        %1315 = vmatprep.subr.mxu0 0.0
        %1316 = vmatpush1.msra.mxu0 0.0
        %1317 = vmatprep.subr.mxu0 0.0
        %1318 = vmatpush1.msra.mxu0 0.0
        %1319 = vmatprep.subr.mxu0 0.0
        %1320 = vmatpush1.msra.mxu0 0.0
        %1321 = vmatprep.subr.mxu0 0.0
        %1322 = vmatpush1.msra.mxu0 0.0
        %1323 = vmatprep.subr.mxu0 0.0
        %1324 = vmatpush1.msra.mxu0 0.0
        %1325 = vmatprep.subr.mxu0 0.0
        %1326 = vmatpush1.msra.mxu0 0.0
        %1327 = vmatprep.subr.mxu0 0.0
        %1328 = vmatpush1.msra.mxu0 0.0
        %1329 = vmatprep.subr.mxu0 0.0
        %1330 = vmatpush1.msra.mxu0 0.0
        %1331 = vmatprep.subr.mxu0 0.0
        %1332 = vmatpush1.msra.mxu0 0.0
        %1333 = vmatprep.subr.mxu0 0.0
        %1334 = vmatpush1.msra.mxu0 0.0
        %1335 = vmatprep.subr.mxu0 0.0
        %1336 = vmatpush1.msra.mxu0 0.0
        %1337 = vmatprep.subr.mxu0 0.0
        %1338 = vmatpush1.msra.mxu0 0.0
        %1339 = vmatprep.subr.mxu0 0.0
        %1340 = vmatpush1.msra.mxu0 0.0
        %1341 = vmatprep.subr.mxu0 0.0
        %1342 = vmatpush1.msra.mxu0 0.0
        %1343 = vmatprep.subr.mxu0 0.0
        %1344 = vmatpush1.msra.mxu0 0.0
        %1345 = vmatprep.subr.mxu0 0.0
        %1346 = vmatpush1.msra.mxu0 0.0
        %1347 = vmatprep.subr.mxu0 0.0
        %1348 = vmatpush1.msra.mxu0 0.0
        %1349 = vmatprep.subr.mxu0 0.0
        %1350 = vmatpush1.msra.mxu0 0.0
        %1351 = vmatprep.subr.mxu0 0.0
        %1352 = vmatpush1.msra.mxu0 0.0
        %1353 = vmatprep.subr.mxu0 0.0
        %1354 = vmatpush1.msra.mxu0 0.0
        %1355 = vmatprep.subr.mxu0 0.0
        %1356 = vmatpush1.msra.mxu0 0.0
        %1357 = vmatprep.subr.mxu0 0.0
        %1358 = vmatpush1.msra.mxu0 0.0
        %1359 = vmatprep.mubr.f32.mxu0 0.0
        %v1360 = vand.u32 %v356, 4294901760
        %v1361 = vsub.f32 %v356, %v1360
        %v1362 = vand.u32 %v1361, 4294901760
        %1363 = vmatmul.mubr.f32.gmra.mrb[0].mxu0 %v1362
        %v1364 = vpop.f32.mrb[0].mxu0
        %v1365 = vadd.f32 %v1284, %v1364
        %v1366 = vpop.f32.mrb[0].mxu0
        %1367 = vdwg.mxu0
        %1368 = vmatprep.subr.mxu0 0.0
        %v1369 = vand.u32 %v229, 4294901760
        %v1370 = vsub.f32 %v229, %v1369
        %v1371 = vand.u32 %v1370, 4294901760
        %1372 = vmatpush1.msra.mxu0 %v1371
        %1373 = vmatprep.subr.mxu0 0.0
        %v1374 = vand.u32 %v235, 4294901760
        %v1375 = vsub.f32 %v235, %v1374
        %v1376 = vand.u32 %v1375, 4294901760
        %1377 = vmatpush1.msra.mxu0 %v1376
        %1378 = vmatprep.subr.mxu0 0.0
        %v1379 = vand.u32 %v268, 4294901760
        %v1380 = vsub.f32 %v268, %v1379
        %v1381 = vand.u32 %v1380, 4294901760
        %1382 = vmatpush1.msra.mxu0 %v1381
        %1383 = vmatprep.subr.mxu0 0.0
        %v1384 = vand.u32 %v274, 4294901760
        %v1385 = vsub.f32 %v274, %v1384
        %v1386 = vand.u32 %v1385, 4294901760
        %1387 = vmatpush1.msra.mxu0 %v1386
        %1388 = vmatprep.subr.mxu0 0.0
        %v1389 = vand.u32 %v307, 4294901760
        %v1390 = vsub.f32 %v307, %v1389
        %v1391 = vand.u32 %v1390, 4294901760
        %1392 = vmatpush1.msra.mxu0 %v1391
        %1393 = vmatprep.subr.mxu0 0.0
        %v1394 = vand.u32 %v313, 4294901760
        %v1395 = vsub.f32 %v313, %v1394
        %v1396 = vand.u32 %v1395, 4294901760
        %1397 = vmatpush1.msra.mxu0 %v1396
        %1398 = vmatprep.subr.mxu0 0.0
        %v1399 = vand.u32 %v346, 4294901760
        %v1400 = vsub.f32 %v346, %v1399
        %v1401 = vand.u32 %v1400, 4294901760
        %1402 = vmatpush1.msra.mxu0 %v1401
        %1403 = vmatprep.subr.mxu0 0.0
        %v1404 = vand.u32 %v352, 4294901760
        %v1405 = vsub.f32 %v352, %v1404
        %v1406 = vand.u32 %v1405, 4294901760
        %1407 = vmatpush1.msra.mxu0 %v1406
        %1408 = vmatprep.subr.mxu0 0.0
        %1409 = vmatpush1.msra.mxu0 0.0
        %1410 = vmatprep.subr.mxu0 0.0
        %1411 = vmatpush1.msra.mxu0 0.0
        %1412 = vmatprep.subr.mxu0 0.0
        %1413 = vmatpush1.msra.mxu0 0.0
        %1414 = vmatprep.subr.mxu0 0.0
        %1415 = vmatpush1.msra.mxu0 0.0
        %1416 = vmatprep.subr.mxu0 0.0
        %1417 = vmatpush1.msra.mxu0 0.0
        %1418 = vmatprep.subr.mxu0 0.0
        %1419 = vmatpush1.msra.mxu0 0.0
        %1420 = vmatprep.subr.mxu0 0.0
        %1421 = vmatpush1.msra.mxu0 0.0
        %1422 = vmatprep.subr.mxu0 0.0
        %1423 = vmatpush1.msra.mxu0 0.0
        %1424 = vmatprep.subr.mxu0 0.0
        %1425 = vmatpush1.msra.mxu0 0.0
        %1426 = vmatprep.subr.mxu0 0.0
        %1427 = vmatpush1.msra.mxu0 0.0
        %1428 = vmatprep.subr.mxu0 0.0
        %1429 = vmatpush1.msra.mxu0 0.0
        %1430 = vmatprep.subr.mxu0 0.0
        %1431 = vmatpush1.msra.mxu0 0.0
        %1432 = vmatprep.subr.mxu0 0.0
        %1433 = vmatpush1.msra.mxu0 0.0
        %1434 = vmatprep.subr.mxu0 0.0
        %1435 = vmatpush1.msra.mxu0 0.0
        %1436 = vmatprep.subr.mxu0 0.0
        %1437 = vmatpush1.msra.mxu0 0.0
        %1438 = vmatprep.subr.mxu0 0.0
        %1439 = vmatpush1.msra.mxu0 0.0
        %1440 = vmatprep.subr.mxu0 0.0
        %1441 = vmatpush1.msra.mxu0 0.0
        %1442 = vmatprep.subr.mxu0 0.0
        %1443 = vmatpush1.msra.mxu0 0.0
        %1444 = vmatprep.subr.mxu0 0.0
        %1445 = vmatpush1.msra.mxu0 0.0
        %1446 = vmatprep.subr.mxu0 0.0
        %1447 = vmatpush1.msra.mxu0 0.0
        %1448 = vmatprep.subr.mxu0 0.0
        %1449 = vmatpush1.msra.mxu0 0.0
        %1450 = vmatprep.subr.mxu0 0.0
        %1451 = vmatpush1.msra.mxu0 0.0
        %1452 = vmatprep.subr.mxu0 0.0
        %1453 = vmatpush1.msra.mxu0 0.0
        %1454 = vmatprep.subr.mxu0 0.0
        %1455 = vmatpush1.msra.mxu0 0.0
        %1456 = vmatprep.mubr.f32.mxu0 0.0
        %v1457 = vand.u32 %v356, 4294901760
        %1458 = vmatmul.mubr.f32.gmra.mrb[0].mxu0 %v1457
        %v1459 = vpop.f32.mrb[0].mxu0
        %v1460 = vadd.f32 %v1365, %v1459
        %v1461 = vpop.f32.mrb[0].mxu0
        %1462 = vdwg.mxu0
        %1463 = vmatprep.subr.mxu0 0.0
        %v1464 = vand.u32 %v229, 4294901760
        %1465 = vmatpush1.msra.mxu0 %v1464
        %1466 = vmatprep.subr.mxu0 0.0
        %v1467 = vand.u32 %v235, 4294901760
        %1468 = vmatpush1.msra.mxu0 %v1467
        %1469 = vmatprep.subr.mxu0 0.0
        %v1470 = vand.u32 %v268, 4294901760
        %1471 = vmatpush1.msra.mxu0 %v1470
        %1472 = vmatprep.subr.mxu0 0.0
        %v1473 = vand.u32 %v274, 4294901760
        %1474 = vmatpush1.msra.mxu0 %v1473
        %1475 = vmatprep.subr.mxu0 0.0
        %v1476 = vand.u32 %v307, 4294901760
        %1477 = vmatpush1.msra.mxu0 %v1476
        %1478 = vmatprep.subr.mxu0 0.0
        %v1479 = vand.u32 %v313, 4294901760
        %1480 = vmatpush1.msra.mxu0 %v1479
        %1481 = vmatprep.subr.mxu0 0.0
        %v1482 = vand.u32 %v346, 4294901760
        %1483 = vmatpush1.msra.mxu0 %v1482
        %1484 = vmatprep.subr.mxu0 0.0
        %v1485 = vand.u32 %v352, 4294901760
        %1486 = vmatpush1.msra.mxu0 %v1485
        %1487 = vmatprep.subr.mxu0 0.0
        %1488 = vmatpush1.msra.mxu0 0.0
        %1489 = vmatprep.subr.mxu0 0.0
        %1490 = vmatpush1.msra.mxu0 0.0
        %1491 = vmatprep.subr.mxu0 0.0
        %1492 = vmatpush1.msra.mxu0 0.0
        %1493 = vmatprep.subr.mxu0 0.0
        %1494 = vmatpush1.msra.mxu0 0.0
        %1495 = vmatprep.subr.mxu0 0.0
        %1496 = vmatpush1.msra.mxu0 0.0
        %1497 = vmatprep.subr.mxu0 0.0
        %1498 = vmatpush1.msra.mxu0 0.0
        %1499 = vmatprep.subr.mxu0 0.0
        %1500 = vmatpush1.msra.mxu0 0.0
        %1501 = vmatprep.subr.mxu0 0.0
        %1502 = vmatpush1.msra.mxu0 0.0
        %1503 = vmatprep.subr.mxu0 0.0
        %1504 = vmatpush1.msra.mxu0 0.0
        %1505 = vmatprep.subr.mxu0 0.0
        %1506 = vmatpush1.msra.mxu0 0.0
        %1507 = vmatprep.subr.mxu0 0.0
        %1508 = vmatpush1.msra.mxu0 0.0
        %1509 = vmatprep.subr.mxu0 0.0
        %1510 = vmatpush1.msra.mxu0 0.0
        %1511 = vmatprep.subr.mxu0 0.0
        %1512 = vmatpush1.msra.mxu0 0.0
        %1513 = vmatprep.subr.mxu0 0.0
        %1514 = vmatpush1.msra.mxu0 0.0
        %1515 = vmatprep.subr.mxu0 0.0
        %1516 = vmatpush1.msra.mxu0 0.0
        %1517 = vmatprep.subr.mxu0 0.0
        %1518 = vmatpush1.msra.mxu0 0.0
        %1519 = vmatprep.subr.mxu0 0.0
        %1520 = vmatpush1.msra.mxu0 0.0
        %1521 = vmatprep.subr.mxu0 0.0
        %1522 = vmatpush1.msra.mxu0 0.0
        %1523 = vmatprep.subr.mxu0 0.0
        %1524 = vmatpush1.msra.mxu0 0.0
        %1525 = vmatprep.subr.mxu0 0.0
        %1526 = vmatpush1.msra.mxu0 0.0
        %1527 = vmatprep.subr.mxu0 0.0
        %1528 = vmatpush1.msra.mxu0 0.0
        %1529 = vmatprep.subr.mxu0 0.0
        %1530 = vmatpush1.msra.mxu0 0.0
        %1531 = vmatprep.subr.mxu0 0.0
        %1532 = vmatpush1.msra.mxu0 0.0
        %1533 = vmatprep.subr.mxu0 0.0
        %1534 = vmatpush1.msra.mxu0 0.0
        %1535 = vmatprep.mubr.f32.mxu0 0.0
        %v1536 = vand.u32 %v356, 4294901760
        %1537 = vmatmul.mubr.f32.gmra.mrb[0].mxu0 %v1536
        %v1538 = vpop.f32.mrb[0].mxu0
        %v1539 = vadd.f32 %v1460, %v1538
        %v1540 = vpop.f32.mrb[0].mxu0
        %1541 = vdwg.mxu0
        %v1545 = vrot.slane %v1001, 4
        %v1546 = vrot.slane %v1003, 4
        %v1547 = vrot.slane %v1539, 4
        %v1551 = vrcp.pop %v1545
        %v1552 = vmul.f32 %v1001, %v1551
        %v1553 = vrcp.pop %v1546
        %v1554 = vmul.f32 %v1003, %v1553
        %v1555 = vrcp.pop %v1547
        %v1556 = vmul.f32 %v1539, %v1555
        %v1559 = vcombine.low %v1552, %v1554
        %1561 = vst [vmem:[%s161] sm:$0xff] %v1559
        %1562 = vst [vmem:[%s161 + $0x8] sm:$0xf] %v1556
        %s1563 = sand.u32 %s87, 1
        %s1564 = scalar_lea.sflag [#allocation3], %s1563
        %s1565 = sand.u32 %s87, 1
        %s1566 = smul.addr %s1565, 12
        %s1567 = scalar_lea.vmem [#allocation2], %s1566
        // Predicated region
        $region29: #{dfl_forward.1} parent=27 // pred_check
          %p1568 = pneg %p97
        $region30: #{dfl_forward.1} parent=27 // pred_check_branch
          %1570 = sbr.rel (%p1568) target = $region32
        $region31: #{dfl_forward.1} parent=27 // pred_region
          %s1571 = smul.u32 3, %s21
          %s1573 = ssub.s32 192, 192
          %1574 = vsyncadd %s1564, %s1573
          %s1575 = smul.addr %s20, 3
          %s1576 = sadd.s32 %s1571, %s1575
          %s1577 = smul.addr %s1576, 64
          %s1578 = scalar_lea.hbm %s2, %s1577
          %s1580 = sshll.u32 %s1567, 4
          %s1581 = int_to_ptr.vmem [resolvable:$true] %s1580
          %1583 = dma.vmem_to_hbm [thread:$0]  %s1581, 192, %s1578, %s1564
        $region32: #{dfl_forward.1} parent=27 // pred_fallthru
          _
      $region28: #{dfl_forward.1} parent=5 // pred_fallthru
        _
      %p1584 = scmp.le.s32.totalorder 2, %s11
      // Predicated region
      $region33: #{dfl_forward.1} parent=5 // pred_check
        %p1585 = pneg %p1584
      $region34: #{dfl_forward.1} parent=5 // pred_check_branch
        %1587 = sbr.rel (%p1585) target = $region36
      $region35: #{dfl_forward.1} parent=5 // pred_region
        %s1588 = ssub.s32 %s11, 2
        // Predicated region
        $region37: #{dfl_forward.1} parent=35 // pred_check
          %p1589 = pneg %p103
        $region38: #{dfl_forward.1} parent=35 // pred_check_branch
          %1591 = sbr.rel (%p1589) target = $region40
        $region39: #{dfl_forward.1} parent=35 // pred_region
          %s1592 = sand.u32 %s88, 1
          %s1593 = scalar_lea.sflag [#allocation3], %s1592
          %s1594 = sand.u32 %s88, 1
          %s1595 = smul.addr %s1594, 12
          %s1596 = scalar_lea.vmem [#allocation2], %s1595
          %1597 = dma.done %s1593, 192
        $region40: #{dfl_forward.1} parent=35 // pred_fallthru
          _
      $region36: #{dfl_forward.1} parent=5 // pred_fallthru
        _
    $region6: #{dfl_forward.1} parent=1 // loop_footer
      %s15 = sadd.s32 1, %s11
    $region7: #{dfl_forward.1} parent=1 // loop_footer_branch
      %10 = sbr.rel target = $region3
    $region8: #{dfl_forward.1} parent=1 // loop_exit
      _
    %1598 = vsyncpa [#allocation3], 1
    %s1599 = scalar_lea.sflag [#allocation3], 1
    %1600 = vsyncpa %s1599, 1

</llo_original>
